<compile_context>
chip_gen: v7x
topology: tpu7x:2x2x1
jax: 0.10.0
libtpu: 0.0.40
codegen_flags: <defaults>
</compile_context>

<pallas_src>
import functools

import jax
import jax.numpy as jnp
from jax.experimental import pallas as pl
from jax.experimental.pallas import tpu as pltpu

LN_EPS = 1e-5  # torch.nn.LayerNorm default


def _round_up(x, m):
    return ((x + m - 1) // m) * m


def _supports_bf16_elementwise():
    """bf16 VPU/EUP exists on v6e (Trillium) and v7x; not on v5e or earlier."""
    try:
        kind = jax.devices()[0].device_kind.lower()
    except Exception:
        return False
    return ("v6" in kind) or ("v7" in kind) or ("trillium" in kind)


def _ln_tanh(x, gamma, beta, *, bf16_elem):
    """tanh(LayerNorm(x)) over the last dim; returns bf16 (next matmul operand).

    Statistics (sum, sum-of-squares, mean, inv-std) and the mean subtraction stay in
    f32; variance is clamped at 0 (single-pass E[x^2]-E[x]^2 can go slightly negative).
    When bf16_elem, the scale/shift/tanh runs in bf16 (2x elements per vreg on v6e/v7x).
    """
    n = x.shape[-1]
    s1 = jnp.sum(x, axis=-1, keepdims=True)
    s2 = jnp.sum(x * x, axis=-1, keepdims=True)
    mean = s1 * (1.0 / n)
    var = jnp.maximum(s2 * (1.0 / n) - mean * mean, 0.0)
    inv = jax.lax.rsqrt(var + LN_EPS)
    if bf16_elem:
        bf16 = jnp.bfloat16
        xc = (x - mean).astype(bf16)  # subtract in f32, then drop to bf16
        return jnp.tanh(xc * inv.astype(bf16) * gamma.astype(bf16) + beta.astype(bf16))
    y = jnp.tanh((x - mean) * inv * gamma + beta)
    return y.astype(jnp.bfloat16)


def critic_kernel(sa_ref,
                  w1_ref, b1_ref, g1_ref, be1_ref,
                  w2_ref, b2_ref, g2_ref, be2_ref,
                  w3_ref, b3_ref, g3_ref, be3_ref,
                  w4_ref, b4_ref,
                  out_ref, *, bf16_elem):
    bf16 = jnp.bfloat16

    # Layer 1: single bf16 MXU matmul on the pre-concatenated (s, a) rows.
    h = jnp.dot(sa_ref[...].astype(bf16), w1_ref[...],
                preferred_element_type=jnp.float32) + b1_ref[...]
    h = _ln_tanh(h, g1_ref[...], be1_ref[...], bf16_elem=bf16_elem)

    # Layer 2
    h = jnp.dot(h, w2_ref[...], preferred_element_type=jnp.float32) + b2_ref[...]
    h = _ln_tanh(h, g2_ref[...], be2_ref[...], bf16_elem=bf16_elem)

    # Layer 3
    h = jnp.dot(h, w3_ref[...], preferred_element_type=jnp.float32) + b3_ref[...]
    h = _ln_tanh(h, g3_ref[...], be3_ref[...], bf16_elem=bf16_elem)

    # Layer 4 (N=1): f32 VPU multiply + lane reduce (skip a degenerate 1-column matmul).
    q = jnp.sum(h.astype(jnp.float32) * w4_ref[...], axis=-1, keepdims=True) + b4_ref[...]
    out_ref[...] = q.astype(out_ref.dtype)


def single_critic_forward(s, a, params, *, block_b=256, bf16_elem=None):
    """s: (B, state_dim), a: (B, action_dim) -> q: (B, 1).

    block_b: max batch rows per grid step (256 is VMEM-safe on v5e/v6e/v7x).
    bf16_elem: run the LN-normalize/tanh path in bf16 (auto: True on v6e/v7x).
    """
    if bf16_elem is None:
        bf16_elem = _supports_bf16_elementwise()

    B = s.shape[0]
    sa = jnp.concatenate([s, a], axis=-1)  # XLA-side concat; trivial (B x 16 f32)
    in_dim = sa.shape[1]

    # Batch tile: multiple of 8 sublanes, capped at block_b, and chosen so the grid
    # has >= 2 steps whenever the batch allows (keeps both v7x TensorCores busy).
    TB = max(8, min(block_b, _round_up(pl.cdiv(B, 2), 8)))
    B_pad = _round_up(B, TB)
    if B_pad != B:
        sa = jnp.pad(sa, ((0, B_pad - B), (0, 0)))

    args = (
        sa,
        params["w1"], params["b1"], params["g1"], params["be1"],
        params["w2"], params["b2"], params["g2"], params["be2"],
        params["w3"], params["b3"], params["g3"], params["be3"],
        params["w4"], params["b4"],
    )

    def const_spec(x):
        # Constant block index -> parameter DMA is skipped after the first grid step.
        return pl.BlockSpec(x.shape, lambda i: (0, 0))

    in_specs = [pl.BlockSpec((TB, in_dim), lambda i: (i, 0))]
    in_specs += [const_spec(x) for x in args[1:]]

    q = pl.pallas_call(
        functools.partial(critic_kernel, bf16_elem=bf16_elem),
        out_shape=jax.ShapeDtypeStruct((B_pad, 1), jnp.float32),
        grid=(B_pad // TB,),
        in_specs=in_specs,
        out_specs=pl.BlockSpec((TB, 1), lambda i: (i, 0)),
        compiler_params=pltpu.CompilerParams(
            dimension_semantics=("parallel",),
            vmem_limit_bytes=32 << 20,
        ),
    )(*args)
    return q[:B]


def init_params(key, state_dim, action_dim, hidden_width):
    """Deterministic synthetic parameters (same shapes/semantics as the PyTorch module).

    W1/W2/W3 are stored in bf16 (MXU inputs); biases, LN params and the tiny final
    layer stay f32.  w4 is stored as a (1, hidden_width) row for the VPU final layer.
    """
    in_dim = state_dim + action_dim
    params = {}
    keys = jax.random.split(key, 8)

    def linear(kw, kb, din, dout, shape_w, wdtype):
        bound = 1.0 / (din ** 0.5)  # PyTorch Linear default init range
        w = jax.random.uniform(kw, shape_w, jnp.float32, -bound, bound)
        b = jax.random.uniform(kb, (1, dout), jnp.float32, -bound, bound)
        return w.astype(wdtype), b

    params["w1"], params["b1"] = linear(keys[0], keys[1], in_dim, 2048,
                                        (in_dim, 2048), jnp.bfloat16)
    params["w2"], params["b2"] = linear(keys[2], keys[3], 2048, hidden_width,
                                        (2048, hidden_width), jnp.bfloat16)
    params["w3"], params["b3"] = linear(keys[4], keys[5], hidden_width, hidden_width,
                                        (hidden_width, hidden_width), jnp.bfloat16)
    params["w4"], params["b4"] = linear(keys[6], keys[7], hidden_width, 1,
                                        (1, hidden_width), jnp.float32)

    # LayerNorm affine params (PyTorch default: weight=1, bias=0)
    params["g1"] = jnp.ones((1, 2048), jnp.float32)
    params["be1"] = jnp.zeros((1, 2048), jnp.float32)
    params["g2"] = jnp.ones((1, hidden_width), jnp.float32)
    params["be2"] = jnp.zeros((1, hidden_width), jnp.float32)
    params["g3"] = jnp.ones((1, hidden_width), jnp.float32)
    params["be3"] = jnp.zeros((1, hidden_width), jnp.float32)
    return params


def reference_forward(s, a, p, *, bf16_elem):
    """Plain-JAX reference using the exact numeric recipe the kernel implements."""
    x = jnp.concatenate([s, a], axis=-1)
    h = jnp.dot(x.astype(jnp.bfloat16), p["w1"],
                preferred_element_type=jnp.float32) + p["b1"]
    h = _ln_tanh(h, p["g1"], p["be1"], bf16_elem=bf16_elem)
    h = jnp.dot(h, p["w2"], preferred_element_type=jnp.float32) + p["b2"]
    h = _ln_tanh(h, p["g2"], p["be2"], bf16_elem=bf16_elem)
    h = jnp.dot(h, p["w3"], preferred_element_type=jnp.float32) + p["b3"]
    h = _ln_tanh(h, p["g3"], p["be3"], bf16_elem=bf16_elem)
    return jnp.sum(h.astype(jnp.float32) * p["w4"], axis=-1, keepdims=True) + p["b4"]


def reference_forward_f32(s, a, p):
    """Full-f32 reference matching PyTorch Linear/LayerNorm semantics."""
    def ln(x, g, b):
        m = jnp.mean(x, axis=-1, keepdims=True)
        v = jnp.mean((x - m) ** 2, axis=-1, keepdims=True)
        return (x - m) * jax.lax.rsqrt(v + LN_EPS) * g + b

    x = jnp.concatenate([s, a], axis=-1)
    h = x @ p["w1"].astype(jnp.float32) + p["b1"]
    h = jnp.tanh(ln(h, p["g1"], p["be1"]))
    h = h @ p["w2"].astype(jnp.float32) + p["b2"]
    h = jnp.tanh(ln(h, p["g2"], p["be2"]))
    h = h @ p["w3"].astype(jnp.float32) + p["b3"]
    h = jnp.tanh(ln(h, p["g3"], p["be3"]))
    return jnp.sum(h * p["w4"], axis=-1, keepdims=True) + p["b4"]


if __name__ == "__main__":
    state_dim, action_dim, hidden_width = 12, 4, 128
    bf16_elem = _supports_bf16_elementwise()

    key = jax.random.PRNGKey(0)
    k_s, k_a, k_p = jax.random.split(key, 3)
    params = init_params(k_p, state_dim, action_dim, hidden_width)

    # Case 1: small deployment-style batch, single grid step.
    batch = 8
    s = jax.random.normal(k_s, (batch, state_dim), jnp.float32)
    a = jax.random.normal(k_a, (batch, action_dim), jnp.float32)
    q = jax.block_until_ready(single_critic_forward(s, a, params))
    q_ref = reference_forward(s, a, params, bf16_elem=bf16_elem)
    q_f32 = reference_forward_f32(s, a, params)
    assert q.shape == (batch, 1)
    assert jnp.allclose(q, q_ref, atol=2e-3, rtol=2e-3)
    assert jnp.allclose(q, q_f32, atol=0.1)  # vs true f32 PyTorch-style semantics

    # Case 2: batch that needs padding and a >=2-step grid (exercises pipeline + megacore
    # tiling path: TB=16, B_pad=32, grid=2).
    batch2 = 24
    s2 = jax.random.normal(jax.random.PRNGKey(1), (batch2, state_dim), jnp.float32)
    a2 = jax.random.normal(jax.random.PRNGKey(2), (batch2, action_dim), jnp.float32)
    q2 = jax.block_until_ready(single_critic_forward(s2, a2, params))
    q2_ref = reference_forward(s2, a2, params, bf16_elem=bf16_elem)
    q2_f32 = reference_forward_f32(s2, a2, params)
    assert q2.shape == (batch2, 1)
    assert jnp.allclose(q2, q2_ref, atol=2e-3, rtol=2e-3)
    assert jnp.allclose(q2, q2_f32, atol=0.1)

    print("KERNEL_OK")
</pallas_src>

<mosaic_0001>
module attributes {stable_mosaic.version = 11 : i64} {
  func.func @critic_kernel(%arg0: i32, %arg1: memref<8x16xf32, #tpu.memory_space<vmem>>, %arg2: memref<16x2048xbf16, #tpu.memory_space<vmem>>, %arg3: memref<1x2048xf32, #tpu.memory_space<vmem>>, %arg4: memref<1x2048xf32, #tpu.memory_space<vmem>>, %arg5: memref<1x2048xf32, #tpu.memory_space<vmem>>, %arg6: memref<2048x128xbf16, #tpu.memory_space<vmem>>, %arg7: memref<1x128xf32, #tpu.memory_space<vmem>>, %arg8: memref<1x128xf32, #tpu.memory_space<vmem>>, %arg9: memref<1x128xf32, #tpu.memory_space<vmem>>, %arg10: memref<128x128xbf16, #tpu.memory_space<vmem>>, %arg11: memref<1x128xf32, #tpu.memory_space<vmem>>, %arg12: memref<1x128xf32, #tpu.memory_space<vmem>>, %arg13: memref<1x128xf32, #tpu.memory_space<vmem>>, %arg14: memref<1x128xf32, #tpu.memory_space<vmem>>, %arg15: memref<1x1xf32, #tpu.memory_space<vmem>>, %arg16: memref<8x1xf32, #tpu.memory_space<vmem>>) attributes {dimension_semantics = [#tpu.dimension_semantics<parallel>], iteration_bounds = array<i64: 1>, scalar_prefetch = 0 : i64, scratch_operands = 0 : i64, tpu.core_type = #tpu.core_type<tc>, window_params = [{transform_indices = @transform_0, window_bounds = array<i64: 8, 16>}, {pipeline_mode = #tpu.pipeline_mode<synchronous>, transform_indices = @transform_1, window_bounds = array<i64: 16, 2048>}, {pipeline_mode = #tpu.pipeline_mode<synchronous>, transform_indices = @transform_2, window_bounds = array<i64: 1, 2048>}, {pipeline_mode = #tpu.pipeline_mode<synchronous>, transform_indices = @transform_3, window_bounds = array<i64: 1, 2048>}, {pipeline_mode = #tpu.pipeline_mode<synchronous>, transform_indices = @transform_4, window_bounds = array<i64: 1, 2048>}, {pipeline_mode = #tpu.pipeline_mode<synchronous>, transform_indices = @transform_5, window_bounds = array<i64: 2048, 128>}, {pipeline_mode = #tpu.pipeline_mode<synchronous>, transform_indices = @transform_6, window_bounds = array<i64: 1, 128>}, {pipeline_mode = #tpu.pipeline_mode<synchronous>, transform_indices = @transform_7, window_bounds = array<i64: 1, 128>}, {pipeline_mode = #tpu.pipeline_mode<synchronous>, transform_indices = @transform_8, window_bounds = array<i64: 1, 128>}, {pipeline_mode = #tpu.pipeline_mode<synchronous>, transform_indices = @transform_9, window_bounds = array<i64: 128, 128>}, {pipeline_mode = #tpu.pipeline_mode<synchronous>, transform_indices = @transform_10, window_bounds = array<i64: 1, 128>}, {pipeline_mode = #tpu.pipeline_mode<synchronous>, transform_indices = @transform_11, window_bounds = array<i64: 1, 128>}, {pipeline_mode = #tpu.pipeline_mode<synchronous>, transform_indices = @transform_12, window_bounds = array<i64: 1, 128>}, {pipeline_mode = #tpu.pipeline_mode<synchronous>, transform_indices = @transform_13, window_bounds = array<i64: 1, 128>}, {pipeline_mode = #tpu.pipeline_mode<synchronous>, transform_indices = @transform_14, window_bounds = array<i64: 1, 1>}, {transform_indices = @transform_15, window_bounds = array<i64: 8, 1>}]} {
    %c0 = arith.constant 0 : index
    %c0_0 = arith.constant 0 : index
    %0 = vector.load %arg1[%c0, %c0_0] : memref<8x16xf32, #tpu.memory_space<vmem>>, vector<8x16xf32>
    %1 = arith.truncf %0 : vector<8x16xf32> to vector<8x16xbf16>
    %c0_1 = arith.constant 0 : index
    %c0_2 = arith.constant 0 : index
    %2 = vector.load %arg2[%c0_1, %c0_2] : memref<16x2048xbf16, #tpu.memory_space<vmem>>, vector<16x2048xbf16>
    %cst = arith.constant dense<0.000000e+00> : vector<8x2048xf32>
    %3 = tpu.matmul %1, %2, %cst {dimension_numbers = #tpu.dot_dimension_numbers<[1], [0], [0], [1], [0, 0, 1, 1], [], []>} : vector<8x16xbf16>, vector<16x2048xbf16>, vector<8x2048xf32> -> vector<8x2048xf32>
    %c0_3 = arith.constant 0 : index
    %c0_4 = arith.constant 0 : index
    %4 = vector.load %arg3[%c0_3, %c0_4] : memref<1x2048xf32, #tpu.memory_space<vmem>>, vector<1x2048xf32>
    %5 = vector.broadcast %4 : vector<1x2048xf32> to vector<8x2048xf32>
    %6 = arith.addf %3, %5 : vector<8x2048xf32>
    %c0_5 = arith.constant 0 : index
    %c0_6 = arith.constant 0 : index
    %7 = vector.load %arg4[%c0_5, %c0_6] : memref<1x2048xf32, #tpu.memory_space<vmem>>, vector<1x2048xf32>
    %c0_7 = arith.constant 0 : index
    %c0_8 = arith.constant 0 : index
    %8 = vector.load %arg5[%c0_7, %c0_8] : memref<1x2048xf32, #tpu.memory_space<vmem>>, vector<1x2048xf32>
    %cst_9 = arith.constant dense<0.000000e+00> : vector<8xf32>
    %9 = vector.multi_reduction <add>, %6, %cst_9 [1] : vector<8x2048xf32> to vector<8xf32>
    %10 = vector.shape_cast %9 : vector<8xf32> to vector<8x1xf32>
    %11 = arith.mulf %6, %6 : vector<8x2048xf32>
    %cst_10 = arith.constant dense<0.000000e+00> : vector<8xf32>
    %12 = vector.multi_reduction <add>, %11, %cst_10 [1] : vector<8x2048xf32> to vector<8xf32>
    %13 = vector.shape_cast %12 : vector<8xf32> to vector<8x1xf32>
    %cst_11 = arith.constant 4.8828125E-4 : f32
    %14 = vector.broadcast %cst_11 : f32 to vector<8x1xf32>
    %15 = arith.mulf %10, %14 : vector<8x1xf32>
    %cst_12 = arith.constant 4.8828125E-4 : f32
    %16 = vector.broadcast %cst_12 : f32 to vector<8x1xf32>
    %17 = arith.mulf %13, %16 : vector<8x1xf32>
    %18 = arith.mulf %15, %15 : vector<8x1xf32>
    %19 = arith.subf %17, %18 : vector<8x1xf32>
    %cst_13 = arith.constant 0.000000e+00 : f32
    %20 = vector.broadcast %cst_13 : f32 to vector<8x1xf32>
    %21 = arith.maximumf %19, %20 : vector<8x1xf32>
    %cst_14 = arith.constant 9.99999974E-6 : f32
    %22 = vector.broadcast %cst_14 : f32 to vector<8x1xf32>
    %23 = arith.addf %21, %22 : vector<8x1xf32>
    %24 = math.rsqrt %23 : vector<8x1xf32>
    %25 = vector.broadcast %15 : vector<8x1xf32> to vector<8x2048xf32>
    %26 = arith.subf %6, %25 : vector<8x2048xf32>
    %27 = vector.broadcast %24 : vector<8x1xf32> to vector<8x2048xf32>
    %28 = arith.mulf %26, %27 : vector<8x2048xf32>
    %29 = vector.broadcast %7 : vector<1x2048xf32> to vector<8x2048xf32>
    %30 = arith.mulf %28, %29 : vector<8x2048xf32>
    %31 = vector.broadcast %8 : vector<1x2048xf32> to vector<8x2048xf32>
    %32 = arith.addf %30, %31 : vector<8x2048xf32>
    %33 = math.tanh %32 : vector<8x2048xf32>
    %34 = arith.truncf %33 : vector<8x2048xf32> to vector<8x2048xbf16>
    %c0_15 = arith.constant 0 : index
    %c0_16 = arith.constant 0 : index
    %35 = vector.load %arg6[%c0_15, %c0_16] : memref<2048x128xbf16, #tpu.memory_space<vmem>>, vector<2048x128xbf16>
    %cst_17 = arith.constant dense<0.000000e+00> : vector<8x128xf32>
    %36 = tpu.matmul %34, %35, %cst_17 {dimension_numbers = #tpu.dot_dimension_numbers<[1], [0], [0], [1], [0, 0, 1, 1], [], []>} : vector<8x2048xbf16>, vector<2048x128xbf16>, vector<8x128xf32> -> vector<8x128xf32>
    %c0_18 = arith.constant 0 : index
    %c0_19 = arith.constant 0 : index
    %37 = vector.load %arg7[%c0_18, %c0_19] : memref<1x128xf32, #tpu.memory_space<vmem>>, vector<1x128xf32>
    %38 = vector.broadcast %37 : vector<1x128xf32> to vector<8x128xf32>
    %39 = arith.addf %36, %38 : vector<8x128xf32>
    %c0_20 = arith.constant 0 : index
    %c0_21 = arith.constant 0 : index
    %40 = vector.load %arg8[%c0_20, %c0_21] : memref<1x128xf32, #tpu.memory_space<vmem>>, vector<1x128xf32>
    %c0_22 = arith.constant 0 : index
    %c0_23 = arith.constant 0 : index
    %41 = vector.load %arg9[%c0_22, %c0_23] : memref<1x128xf32, #tpu.memory_space<vmem>>, vector<1x128xf32>
    %cst_24 = arith.constant dense<0.000000e+00> : vector<8xf32>
    %42 = vector.multi_reduction <add>, %39, %cst_24 [1] : vector<8x128xf32> to vector<8xf32>
    %43 = vector.shape_cast %42 : vector<8xf32> to vector<8x1xf32>
    %44 = arith.mulf %39, %39 : vector<8x128xf32>
    %cst_25 = arith.constant dense<0.000000e+00> : vector<8xf32>
    %45 = vector.multi_reduction <add>, %44, %cst_25 [1] : vector<8x128xf32> to vector<8xf32>
    %46 = vector.shape_cast %45 : vector<8xf32> to vector<8x1xf32>
    %cst_26 = arith.constant 7.812500e-03 : f32
    %47 = vector.broadcast %cst_26 : f32 to vector<8x1xf32>
    %48 = arith.mulf %43, %47 : vector<8x1xf32>
    %cst_27 = arith.constant 7.812500e-03 : f32
    %49 = vector.broadcast %cst_27 : f32 to vector<8x1xf32>
    %50 = arith.mulf %46, %49 : vector<8x1xf32>
    %51 = arith.mulf %48, %48 : vector<8x1xf32>
    %52 = arith.subf %50, %51 : vector<8x1xf32>
    %cst_28 = arith.constant 0.000000e+00 : f32
    %53 = vector.broadcast %cst_28 : f32 to vector<8x1xf32>
    %54 = arith.maximumf %52, %53 : vector<8x1xf32>
    %cst_29 = arith.constant 9.99999974E-6 : f32
    %55 = vector.broadcast %cst_29 : f32 to vector<8x1xf32>
    %56 = arith.addf %54, %55 : vector<8x1xf32>
    %57 = math.rsqrt %56 : vector<8x1xf32>
    %58 = vector.broadcast %48 : vector<8x1xf32> to vector<8x128xf32>
    %59 = arith.subf %39, %58 : vector<8x128xf32>
    %60 = vector.broadcast %57 : vector<8x1xf32> to vector<8x128xf32>
    %61 = arith.mulf %59, %60 : vector<8x128xf32>
    %62 = vector.broadcast %40 : vector<1x128xf32> to vector<8x128xf32>
    %63 = arith.mulf %61, %62 : vector<8x128xf32>
    %64 = vector.broadcast %41 : vector<1x128xf32> to vector<8x128xf32>
    %65 = arith.addf %63, %64 : vector<8x128xf32>
    %66 = math.tanh %65 : vector<8x128xf32>
    %67 = arith.truncf %66 : vector<8x128xf32> to vector<8x128xbf16>
    %c0_30 = arith.constant 0 : index
    %c0_31 = arith.constant 0 : index
    %68 = vector.load %arg10[%c0_30, %c0_31] : memref<128x128xbf16, #tpu.memory_space<vmem>>, vector<128x128xbf16>
    %cst_32 = arith.constant dense<0.000000e+00> : vector<8x128xf32>
    %69 = tpu.matmul %67, %68, %cst_32 {dimension_numbers = #tpu.dot_dimension_numbers<[1], [0], [0], [1], [0, 0, 1, 1], [], []>} : vector<8x128xbf16>, vector<128x128xbf16>, vector<8x128xf32> -> vector<8x128xf32>
    %c0_33 = arith.constant 0 : index
    %c0_34 = arith.constant 0 : index
    %70 = vector.load %arg11[%c0_33, %c0_34] : memref<1x128xf32, #tpu.memory_space<vmem>>, vector<1x128xf32>
    %71 = vector.broadcast %70 : vector<1x128xf32> to vector<8x128xf32>
    %72 = arith.addf %69, %71 : vector<8x128xf32>
    %c0_35 = arith.constant 0 : index
    %c0_36 = arith.constant 0 : index
    %73 = vector.load %arg12[%c0_35, %c0_36] : memref<1x128xf32, #tpu.memory_space<vmem>>, vector<1x128xf32>
    %c0_37 = arith.constant 0 : index
    %c0_38 = arith.constant 0 : index
    %74 = vector.load %arg13[%c0_37, %c0_38] : memref<1x128xf32, #tpu.memory_space<vmem>>, vector<1x128xf32>
    %cst_39 = arith.constant dense<0.000000e+00> : vector<8xf32>
    %75 = vector.multi_reduction <add>, %72, %cst_39 [1] : vector<8x128xf32> to vector<8xf32>
    %76 = vector.shape_cast %75 : vector<8xf32> to vector<8x1xf32>
    %77 = arith.mulf %72, %72 : vector<8x128xf32>
    %cst_40 = arith.constant dense<0.000000e+00> : vector<8xf32>
    %78 = vector.multi_reduction <add>, %77, %cst_40 [1] : vector<8x128xf32> to vector<8xf32>
    %79 = vector.shape_cast %78 : vector<8xf32> to vector<8x1xf32>
    %cst_41 = arith.constant 7.812500e-03 : f32
    %80 = vector.broadcast %cst_41 : f32 to vector<8x1xf32>
    %81 = arith.mulf %76, %80 : vector<8x1xf32>
    %cst_42 = arith.constant 7.812500e-03 : f32
    %82 = vector.broadcast %cst_42 : f32 to vector<8x1xf32>
    %83 = arith.mulf %79, %82 : vector<8x1xf32>
    %84 = arith.mulf %81, %81 : vector<8x1xf32>
    %85 = arith.subf %83, %84 : vector<8x1xf32>
    %cst_43 = arith.constant 0.000000e+00 : f32
    %86 = vector.broadcast %cst_43 : f32 to vector<8x1xf32>
    %87 = arith.maximumf %85, %86 : vector<8x1xf32>
    %cst_44 = arith.constant 9.99999974E-6 : f32
    %88 = vector.broadcast %cst_44 : f32 to vector<8x1xf32>
    %89 = arith.addf %87, %88 : vector<8x1xf32>
    %90 = math.rsqrt %89 : vector<8x1xf32>
    %91 = vector.broadcast %81 : vector<8x1xf32> to vector<8x128xf32>
    %92 = arith.subf %72, %91 : vector<8x128xf32>
    %93 = vector.broadcast %90 : vector<8x1xf32> to vector<8x128xf32>
    %94 = arith.mulf %92, %93 : vector<8x128xf32>
    %95 = vector.broadcast %73 : vector<1x128xf32> to vector<8x128xf32>
    %96 = arith.mulf %94, %95 : vector<8x128xf32>
    %97 = vector.broadcast %74 : vector<1x128xf32> to vector<8x128xf32>
    %98 = arith.addf %96, %97 : vector<8x128xf32>
    %99 = math.tanh %98 : vector<8x128xf32>
    %100 = arith.truncf %99 : vector<8x128xf32> to vector<8x128xbf16>
    %101 = arith.extf %100 : vector<8x128xbf16> to vector<8x128xf32>
    %c0_45 = arith.constant 0 : index
    %c0_46 = arith.constant 0 : index
    %102 = vector.load %arg14[%c0_45, %c0_46] : memref<1x128xf32, #tpu.memory_space<vmem>>, vector<1x128xf32>
    %103 = vector.broadcast %102 : vector<1x128xf32> to vector<8x128xf32>
    %104 = arith.mulf %101, %103 : vector<8x128xf32>
    %cst_47 = arith.constant dense<0.000000e+00> : vector<8xf32>
    %105 = vector.multi_reduction <add>, %104, %cst_47 [1] : vector<8x128xf32> to vector<8xf32>
    %106 = vector.shape_cast %105 : vector<8xf32> to vector<8x1xf32>
    %c0_48 = arith.constant 0 : index
    %c0_49 = arith.constant 0 : index
    %107 = vector.load %arg15[%c0_48, %c0_49] : memref<1x1xf32, #tpu.memory_space<vmem>>, vector<1x1xf32>
    %108 = vector.broadcast %107 : vector<1x1xf32> to vector<8x1xf32>
    %109 = arith.addf %106, %108 : vector<8x1xf32>
    %c0_50 = arith.constant 0 : index
    %c0_51 = arith.constant 0 : index
    %110 = vector.load %arg16[%c0_50, %c0_51] : memref<8x1xf32, #tpu.memory_space<vmem>>, vector<8x1xf32>
    tpu.vector_store %arg16[%c0_50, %c0_51], %109 {strides = array<i32>} : memref<8x1xf32, #tpu.memory_space<vmem>>, vector<8x1xf32>,
    return
  }
  func.func @transform_0(%arg0: i32) -> (i32, i32) {
    %c0_i32 = arith.constant 0 : i32
    %c0_i32_0 = arith.constant 0 : i32
    return %arg0, %c0_i32 : i32, i32
  }
  func.func @transform_1(%arg0: i32) -> (i32, i32) {
    %c0_i32 = arith.constant 0 : i32
    %c0_i32_0 = arith.constant 0 : i32
    %c0_i32_1 = arith.constant 0 : i32
    return %c0_i32, %c0_i32_0 : i32, i32
  }
  func.func @transform_2(%arg0: i32) -> (i32, i32) {
    %c0_i32 = arith.constant 0 : i32
    %c0_i32_0 = arith.constant 0 : i32
    %c0_i32_1 = arith.constant 0 : i32
    return %c0_i32, %c0_i32_0 : i32, i32
  }
  func.func @transform_3(%arg0: i32) -> (i32, i32) {
    %c0_i32 = arith.constant 0 : i32
    %c0_i32_0 = arith.constant 0 : i32
    %c0_i32_1 = arith.constant 0 : i32
    return %c0_i32, %c0_i32_0 : i32, i32
  }
  func.func @transform_4(%arg0: i32) -> (i32, i32) {
    %c0_i32 = arith.constant 0 : i32
    %c0_i32_0 = arith.constant 0 : i32
    %c0_i32_1 = arith.constant 0 : i32
    return %c0_i32, %c0_i32_0 : i32, i32
  }
  func.func @transform_5(%arg0: i32) -> (i32, i32) {
    %c0_i32 = arith.constant 0 : i32
    %c0_i32_0 = arith.constant 0 : i32
    %c0_i32_1 = arith.constant 0 : i32
    return %c0_i32, %c0_i32_0 : i32, i32
  }
  func.func @transform_6(%arg0: i32) -> (i32, i32) {
    %c0_i32 = arith.constant 0 : i32
    %c0_i32_0 = arith.constant 0 : i32
    %c0_i32_1 = arith.constant 0 : i32
    return %c0_i32, %c0_i32_0 : i32, i32
  }
  func.func @transform_7(%arg0: i32) -> (i32, i32) {
    %c0_i32 = arith.constant 0 : i32
    %c0_i32_0 = arith.constant 0 : i32
    %c0_i32_1 = arith.constant 0 : i32
    return %c0_i32, %c0_i32_0 : i32, i32
  }
  func.func @transform_8(%arg0: i32) -> (i32, i32) {
    %c0_i32 = arith.constant 0 : i32
    %c0_i32_0 = arith.constant 0 : i32
    %c0_i32_1 = arith.constant 0 : i32
    return %c0_i32, %c0_i32_0 : i32, i32
  }
  func.func @transform_9(%arg0: i32) -> (i32, i32) {
    %c0_i32 = arith.constant 0 : i32
    %c0_i32_0 = arith.constant 0 : i32
    %c0_i32_1 = arith.constant 0 : i32
    return %c0_i32, %c0_i32_0 : i32, i32
  }
  func.func @transform_10(%arg0: i32) -> (i32, i32) {
    %c0_i32 = arith.constant 0 : i32
    %c0_i32_0 = arith.constant 0 : i32
    %c0_i32_1 = arith.constant 0 : i32
    return %c0_i32, %c0_i32_0 : i32, i32
  }
  func.func @transform_11(%arg0: i32) -> (i32, i32) {
    %c0_i32 = arith.constant 0 : i32
    %c0_i32_0 = arith.constant 0 : i32
    %c0_i32_1 = arith.constant 0 : i32
    return %c0_i32, %c0_i32_0 : i32, i32
  }
  func.func @transform_12(%arg0: i32) -> (i32, i32) {
    %c0_i32 = arith.constant 0 : i32
    %c0_i32_0 = arith.constant 0 : i32
    %c0_i32_1 = arith.constant 0 : i32
    return %c0_i32, %c0_i32_0 : i32, i32
  }
  func.func @transform_13(%arg0: i32) -> (i32, i32) {
    %c0_i32 = arith.constant 0 : i32
    %c0_i32_0 = arith.constant 0 : i32
    %c0_i32_1 = arith.constant 0 : i32
    return %c0_i32, %c0_i32_0 : i32, i32
  }
  func.func @transform_14(%arg0: i32) -> (i32, i32) {
    %c0_i32 = arith.constant 0 : i32
    %c0_i32_0 = arith.constant 0 : i32
    %c0_i32_1 = arith.constant 0 : i32
    return %c0_i32, %c0_i32_0 : i32, i32
  }
  func.func @transform_15(%arg0: i32) -> (i32, i32) {
    %c0_i32 = arith.constant 0 : i32
    %c0_i32_0 = arith.constant 0 : i32
    return %arg0, %c0_i32 : i32, i32
  }
}

</mosaic_0001>

<llo_original>
// kernel: tpu_custom_call.1
$region0: #{tpu_custom_call.1}
  #allocation0 [shape = 'u32[]', space=smem, size = 0x4, offset = 0x4, fixed_abs, tag = 'smem constant byte address 0x4 - core index']
  #allocation1 [shape = 'u32[144,128]{1,0:T(1,128)}', space=vmem, size = 0x12000, scoped, tag = 'internal scratch']
  #allocation2 [shape = 'f32[1,1]{1,0:T(1,128)S(1)}', space=vmem, size = 0x200, scoped, tag = 'scoped memory for tpu_custom_call.1']
  %s0 = inlined_call_operand.hbm [shape: f32[8,16], index: 0, kind: input, shape index: {}]
  %s1 = inlined_call_operand.hbm [shape: bf16[16,2048], index: 1, kind: input, shape index: {}]
  %s2 = inlined_call_operand.hbm [shape: f32[1,2048], index: 2, kind: input, shape index: {}]
  %s3 = inlined_call_operand.hbm [shape: f32[1,2048], index: 3, kind: input, shape index: {}]
  %s4 = inlined_call_operand.vmem [shape: f32[1,2048], index: 4, kind: input, shape index: {}]
  %s5 = inlined_call_operand.hbm [shape: bf16[2048,128], index: 5, kind: input, shape index: {}]
  %s6 = inlined_call_operand.vmem [shape: f32[1,128], index: 6, kind: input, shape index: {}]
  %s7 = inlined_call_operand.vmem [shape: f32[1,128], index: 7, kind: input, shape index: {}]
  %s8 = inlined_call_operand.vmem [shape: f32[1,128], index: 8, kind: input, shape index: {}]
  %s9 = inlined_call_operand.hbm [shape: bf16[128,128], index: 9, kind: input, shape index: {}]
  %s10 = inlined_call_operand.vmem [shape: f32[1,128], index: 10, kind: input, shape index: {}]
  %s11 = inlined_call_operand.vmem [shape: f32[1,128], index: 11, kind: input, shape index: {}]
  %s12 = inlined_call_operand.vmem [shape: f32[1,128], index: 12, kind: input, shape index: {}]
  %s13 = inlined_call_operand.vmem [shape: f32[1,128], index: 13, kind: input, shape index: {}]
  %s14 = inlined_call_operand.<no memory space> [shape: f32[1,1], index: 14, kind: input, shape index: {}]
  %s15 = inlined_call_operand.vmem [shape: f32[8,1], index: 15, kind: output, shape index: {}]
  %s16 = sld [smem:[#allocation0]]
  $region94: #{tpu_custom_call.1} parent=0
    _
  %s18 = ssub.s32 1, %s16
  %s19 = scalar_select 0, %s18, %s16
  %v20 = vstv %s14
  %21 = vst [vmem:[#allocation2] sm:$0x1] %v20
  $region1: #{tpu_custom_call.1} parent=0
    #allocation3 [shape = 'u8[4096]{0}', space=vmem, size = 0x1000, scoped, tag = 'input window, operand 0, single buffered']
    #allocation4 [shape = 's32[1]{0}', space=sflag, size = 0x4, scoped, tag = 'scoped memory for tpu_custom_call.1']
    #allocation5 [shape = 'u8[65536]{0}', space=vmem, size = 0x10000, scoped, tag = 'input window, operand 1, single buffered']
    #allocation6 [shape = 's32[1]{0}', space=sflag, size = 0x4, scoped, tag = 'scoped memory for tpu_custom_call.1']
    #allocation7 [shape = 'u8[8192]{0}', space=vmem, size = 0x2000, scoped, tag = 'input window, operand 2, single buffered']
    #allocation8 [shape = 'u8[8192]{0}', space=vmem, size = 0x2000, scoped, tag = 'input window, operand 3, single buffered']
    #allocation9 [shape = 's32[1]{0}', space=sflag, size = 0x4, scoped, tag = 'scoped memory for tpu_custom_call.1']
    #allocation10 [shape = 'u8[524288]{0}', space=vmem, size = 0x80000, scoped, tag = 'input window, operand 5, single buffered']
    #allocation11 [shape = 'u8[32768]{0}', space=vmem, size = 0x8000, scoped, tag = 'input window, operand 9, single buffered']
    #allocation12 [shape = 's32[1]{0}', space=sflag, size = 0x4, scoped, tag = 'scoped memory for tpu_custom_call.1']
    %22 = vsyncpa [#allocation4], 0
    %23 = vsyncpa [#allocation6], 0
    %24 = vsyncpa [#allocation9], 0
    %25 = vsyncpa [#allocation12], 0
    // Predicated region
    $region2: #{tpu_custom_call.1} parent=1 // pred_check
      _
    $region3: #{tpu_custom_call.1} parent=1 // pred_check_branch
      %27 = sbr.rel (0) target = $region5
    $region4: #{tpu_custom_call.1} parent=1 // pred_region
      %s29 = ssub.s32 128, 128
      %30 = vsyncadd [#allocation4], %s29
      %s32 = sshll.u32 [#allocation3], 4
      %s33 = int_to_ptr.vmem [resolvable:$true] %s32
      %35 = dma.hbm_to_vmem [thread:$0]  %s0, 128, %s33, [#allocation4]
    $region5: #{tpu_custom_call.1} parent=1 // pred_fallthru
      _
    // Predicated region
    $region6: #{tpu_custom_call.1} parent=1 // pred_check
      _
    $region7: #{tpu_custom_call.1} parent=1 // pred_check_branch
      %37 = sbr.rel (0) target = $region9
    $region8: #{tpu_custom_call.1} parent=1 // pred_region
      %s39 = ssub.s32 2048, 2048
      %40 = vsyncadd [#allocation6], %s39
      %s41 = sshll.u32 [#allocation5], 4
      %s42 = int_to_ptr.vmem [resolvable:$true] %s41
      %47 = dma.hbm_to_vmem [thread:$0]  %s1, 2048, %s42, [#allocation6], 1024, 1024, 64
    $region9: #{tpu_custom_call.1} parent=1 // pred_fallthru
      _
    // Predicated region
    $region10: #{tpu_custom_call.1} parent=1 // pred_check
      _
    $region11: #{tpu_custom_call.1} parent=1 // pred_check_branch
      %49 = sbr.rel (0) target = $region13
    $region12: #{tpu_custom_call.1} parent=1 // pred_region
      %s51 = ssub.s32 256, 256
      %52 = vsyncadd [#allocation6], %s51
      %s54 = sshll.u32 [#allocation7], 4
      %s55 = int_to_ptr.vmem [resolvable:$true] %s54
      %57 = dma.hbm_to_vmem [thread:$0]  %s2, 256, %s55, [#allocation6]
    $region13: #{tpu_custom_call.1} parent=1 // pred_fallthru
      _
    // Predicated region
    $region14: #{tpu_custom_call.1} parent=1 // pred_check
      _
    $region15: #{tpu_custom_call.1} parent=1 // pred_check_branch
      %59 = sbr.rel (0) target = $region17
    $region16: #{tpu_custom_call.1} parent=1 // pred_region
      %s61 = ssub.s32 256, 256
      %62 = vsyncadd [#allocation9], %s61
      %s64 = sshll.u32 [#allocation8], 4
      %s65 = int_to_ptr.vmem [resolvable:$true] %s64
      %67 = dma.hbm_to_vmem [thread:$0]  %s3, 256, %s65, [#allocation9]
    $region17: #{tpu_custom_call.1} parent=1 // pred_fallthru
      _
    // Predicated region
    $region18: #{tpu_custom_call.1} parent=1 // pred_check
      _
    $region19: #{tpu_custom_call.1} parent=1 // pred_check_branch
      %69 = sbr.rel (0) target = $region21
    $region20: #{tpu_custom_call.1} parent=1 // pred_region
      _
    $region21: #{tpu_custom_call.1} parent=1 // pred_fallthru
      _
    // Predicated region
    $region22: #{tpu_custom_call.1} parent=1 // pred_check
      _
    $region23: #{tpu_custom_call.1} parent=1 // pred_check_branch
      %71 = sbr.rel (0) target = $region25
    $region24: #{tpu_custom_call.1} parent=1 // pred_region
      %s73 = ssub.s32 16384, 16384
      %74 = vsyncadd [#allocation9], %s73
      %s75 = sshll.u32 [#allocation10], 4
      %s76 = int_to_ptr.vmem [resolvable:$true] %s75
      %81 = dma.hbm_to_vmem [thread:$0]  %s5, 16384, %s76, [#allocation9], 64, 64, 4
    $region25: #{tpu_custom_call.1} parent=1 // pred_fallthru
      _
    // Predicated region
    $region26: #{tpu_custom_call.1} parent=1 // pred_check
      _
    $region27: #{tpu_custom_call.1} parent=1 // pred_check_branch
      %83 = sbr.rel (0) target = $region29
    $region28: #{tpu_custom_call.1} parent=1 // pred_region
      _
    $region29: #{tpu_custom_call.1} parent=1 // pred_fallthru
      _
    // Predicated region
    $region30: #{tpu_custom_call.1} parent=1 // pred_check
      _
    $region31: #{tpu_custom_call.1} parent=1 // pred_check_branch
      %85 = sbr.rel (0) target = $region33
    $region32: #{tpu_custom_call.1} parent=1 // pred_region
      _
    $region33: #{tpu_custom_call.1} parent=1 // pred_fallthru
      _
    // Predicated region
    $region34: #{tpu_custom_call.1} parent=1 // pred_check
      _
    $region35: #{tpu_custom_call.1} parent=1 // pred_check_branch
      %87 = sbr.rel (0) target = $region37
    $region36: #{tpu_custom_call.1} parent=1 // pred_region
      _
    $region37: #{tpu_custom_call.1} parent=1 // pred_fallthru
      _
    // Predicated region
    $region38: #{tpu_custom_call.1} parent=1 // pred_check
      _
    $region39: #{tpu_custom_call.1} parent=1 // pred_check_branch
      %89 = sbr.rel (0) target = $region41
    $region40: #{tpu_custom_call.1} parent=1 // pred_region
      %s91 = ssub.s32 1024, 1024
      %92 = vsyncadd [#allocation12], %s91
      %s93 = sshll.u32 [#allocation11], 4
      %s94 = int_to_ptr.vmem [resolvable:$true] %s93
      %99 = dma.hbm_to_vmem [thread:$0]  %s9, 1024, %s94, [#allocation12], 64, 64, 4
    $region41: #{tpu_custom_call.1} parent=1 // pred_fallthru
      _
    // Predicated region
    $region42: #{tpu_custom_call.1} parent=1 // pred_check
      _
    $region43: #{tpu_custom_call.1} parent=1 // pred_check_branch
      %101 = sbr.rel (0) target = $region45
    $region44: #{tpu_custom_call.1} parent=1 // pred_region
      _
    $region45: #{tpu_custom_call.1} parent=1 // pred_fallthru
      _
    // Predicated region
    $region46: #{tpu_custom_call.1} parent=1 // pred_check
      _
    $region47: #{tpu_custom_call.1} parent=1 // pred_check_branch
      %103 = sbr.rel (0) target = $region49
    $region48: #{tpu_custom_call.1} parent=1 // pred_region
      _
    $region49: #{tpu_custom_call.1} parent=1 // pred_fallthru
      _
    // Predicated region
    $region50: #{tpu_custom_call.1} parent=1 // pred_check
      _
    $region51: #{tpu_custom_call.1} parent=1 // pred_check_branch
      %105 = sbr.rel (0) target = $region53
    $region52: #{tpu_custom_call.1} parent=1 // pred_region
      _
    $region53: #{tpu_custom_call.1} parent=1 // pred_fallthru
      _
    // Predicated region
    $region54: #{tpu_custom_call.1} parent=1 // pred_check
      _
    $region55: #{tpu_custom_call.1} parent=1 // pred_check_branch
      %107 = sbr.rel (0) target = $region57
    $region56: #{tpu_custom_call.1} parent=1 // pred_region
      _
    $region57: #{tpu_custom_call.1} parent=1 // pred_fallthru
      _
    // Predicated region
    $region58: #{tpu_custom_call.1} parent=1 // pred_check
      _
    $region59: #{tpu_custom_call.1} parent=1 // pred_check_branch
      %109 = sbr.rel (0) target = $region61
    $region60: #{tpu_custom_call.1} parent=1 // pred_region
      _
    $region61: #{tpu_custom_call.1} parent=1 // pred_fallthru
      _
    // Predicated region
    $region62: #{tpu_custom_call.1} parent=1 // pred_check
      _
    $region63: #{tpu_custom_call.1} parent=1 // pred_check_branch
      %111 = sbr.rel (0) target = $region65
    $region64: #{tpu_custom_call.1} parent=1 // pred_region
      %112 = dma.done [#allocation4], 128
    $region65: #{tpu_custom_call.1} parent=1 // pred_fallthru
      _
    // Predicated region
    $region66: #{tpu_custom_call.1} parent=1 // pred_check
      _
    $region67: #{tpu_custom_call.1} parent=1 // pred_check_branch
      %114 = sbr.rel (0) target = $region69
    $region68: #{tpu_custom_call.1} parent=1 // pred_region
      %115 = dma.done [#allocation6], 2048
    $region69: #{tpu_custom_call.1} parent=1 // pred_fallthru
      _
    // Predicated region
    $region70: #{tpu_custom_call.1} parent=1 // pred_check
      _
    $region71: #{tpu_custom_call.1} parent=1 // pred_check_branch
      %117 = sbr.rel (0) target = $region73
    $region72: #{tpu_custom_call.1} parent=1 // pred_region
      %118 = dma.done [#allocation6], 256
    $region73: #{tpu_custom_call.1} parent=1 // pred_fallthru
      _
    // Predicated region
    $region74: #{tpu_custom_call.1} parent=1 // pred_check
      _
    $region75: #{tpu_custom_call.1} parent=1 // pred_check_branch
      %120 = sbr.rel (0) target = $region77
    $region76: #{tpu_custom_call.1} parent=1 // pred_region
      %121 = dma.done [#allocation9], 256
    $region77: #{tpu_custom_call.1} parent=1 // pred_fallthru
      _
    // Predicated region
    $region78: #{tpu_custom_call.1} parent=1 // pred_check
      _
    $region79: #{tpu_custom_call.1} parent=1 // pred_check_branch
      %123 = sbr.rel (0) target = $region81
    $region80: #{tpu_custom_call.1} parent=1 // pred_region
      %124 = dma.done [#allocation9], 16384
    $region81: #{tpu_custom_call.1} parent=1 // pred_fallthru
      _
    // Predicated region
    $region82: #{tpu_custom_call.1} parent=1 // pred_check
      _
    $region83: #{tpu_custom_call.1} parent=1 // pred_check_branch
      %126 = sbr.rel (0) target = $region85
    $region84: #{tpu_custom_call.1} parent=1 // pred_region
      %127 = dma.done [#allocation12], 1024
    $region85: #{tpu_custom_call.1} parent=1 // pred_fallthru
      _
    %v129 = vld [vmem:[#allocation3] sm:$0xff]
    %v130 = vpack.c.bf16 %v129, %v129
    %v131 = vld [vmem:[#allocation5] sm:$0xff]
    %v132 = vld [vmem:[#allocation5 + $0x8] sm:$0xff]
    %v133 = vld [vmem:[#allocation5 + $0x10] sm:$0xff]
    %v134 = vld [vmem:[#allocation5 + $0x18] sm:$0xff]
    %v135 = vld [vmem:[#allocation5 + $0x20] sm:$0xff]
    %v136 = vld [vmem:[#allocation5 + $0x28] sm:$0xff]
    %v137 = vld [vmem:[#allocation5 + $0x30] sm:$0xff]
    %v138 = vld [vmem:[#allocation5 + $0x38] sm:$0xff]
    %v139 = vld [vmem:[#allocation5 + $0x40] sm:$0xff]
    %v140 = vld [vmem:[#allocation5 + $0x48] sm:$0xff]
    %v141 = vld [vmem:[#allocation5 + $0x50] sm:$0xff]
    %v142 = vld [vmem:[#allocation5 + $0x58] sm:$0xff]
    %v143 = vld [vmem:[#allocation5 + $0x60] sm:$0xff]
    %v144 = vld [vmem:[#allocation5 + $0x68] sm:$0xff]
    %v145 = vld [vmem:[#allocation5 + $0x70] sm:$0xff]
    %v146 = vld [vmem:[#allocation5 + $0x78] sm:$0xff]
    %v147 = vld [vmem:[#allocation7] sm:$0xff]
    %v148 = vld [vmem:[#allocation7 + $0x8] sm:$0xff]
    %v151 = vlaneseq
    %v152 = vshrl.u32 %v151, 7
    %v153 = vsub.s32 0, %v152
    %v154 = vrot.slane %v147, %v153
    %v155 = vlaneseq
    %v156 = vshrl.u32 %v155, 7
    %v157 = vsub.s32 1, %v156
    %v158 = vrot.slane %v147, %v157
    %v159 = vlaneseq
    %v160 = vshrl.u32 %v159, 7
    %v161 = vsub.s32 2, %v160
    %v162 = vrot.slane %v147, %v161
    %v163 = vlaneseq
    %v164 = vshrl.u32 %v163, 7
    %v165 = vsub.s32 3, %v164
    %v166 = vrot.slane %v147, %v165
    %v167 = vlaneseq
    %v168 = vshrl.u32 %v167, 7
    %v169 = vsub.s32 4, %v168
    %v170 = vrot.slane %v147, %v169
    %v171 = vlaneseq
    %v172 = vshrl.u32 %v171, 7
    %v173 = vsub.s32 5, %v172
    %v174 = vrot.slane %v147, %v173
    %v175 = vlaneseq
    %v176 = vshrl.u32 %v175, 7
    %v177 = vsub.s32 6, %v176
    %v178 = vrot.slane %v147, %v177
    %v179 = vlaneseq
    %v180 = vshrl.u32 %v179, 7
    %v181 = vsub.s32 7, %v180
    %v182 = vrot.slane %v147, %v181
    %v183 = vlaneseq
    %v184 = vshrl.u32 %v183, 7
    %v185 = vsub.s32 0, %v184
    %v186 = vrot.slane %v148, %v185
    %v187 = vlaneseq
    %v188 = vshrl.u32 %v187, 7
    %v189 = vsub.s32 1, %v188
    %v190 = vrot.slane %v148, %v189
    %v191 = vlaneseq
    %v192 = vshrl.u32 %v191, 7
    %v193 = vsub.s32 2, %v192
    %v194 = vrot.slane %v148, %v193
    %v195 = vlaneseq
    %v196 = vshrl.u32 %v195, 7
    %v197 = vsub.s32 3, %v196
    %v198 = vrot.slane %v148, %v197
    %v199 = vlaneseq
    %v200 = vshrl.u32 %v199, 7
    %v201 = vsub.s32 4, %v200
    %v202 = vrot.slane %v148, %v201
    %v203 = vlaneseq
    %v204 = vshrl.u32 %v203, 7
    %v205 = vsub.s32 5, %v204
    %v206 = vrot.slane %v148, %v205
    %v207 = vlaneseq
    %v208 = vshrl.u32 %v207, 7
    %v209 = vsub.s32 6, %v208
    %v210 = vrot.slane %v148, %v209
    %v211 = vlaneseq
    %v212 = vshrl.u32 %v211, 7
    %v213 = vsub.s32 7, %v212
    %v214 = vrot.slane %v148, %v213
    %v247 = vunpack.c.l.b16 %v131
    %v248 = vunpack.c.h.b16 %v131
    %v249 = vunpack.c.l.b16 %v132
    %v250 = vunpack.c.h.b16 %v132
    %v251 = vunpack.c.l.b16 %v133
    %v252 = vunpack.c.h.b16 %v133
    %v253 = vunpack.c.l.b16 %v134
    %v254 = vunpack.c.h.b16 %v134
    %v255 = vunpack.c.l.b16 %v135
    %v256 = vunpack.c.h.b16 %v135
    %v257 = vunpack.c.l.b16 %v136
    %v258 = vunpack.c.h.b16 %v136
    %v259 = vunpack.c.l.b16 %v137
    %v260 = vunpack.c.h.b16 %v137
    %v261 = vunpack.c.l.b16 %v138
    %v262 = vunpack.c.h.b16 %v138
    %v263 = vunpack.c.l.b16 %v139
    %v264 = vunpack.c.h.b16 %v139
    %v265 = vunpack.c.l.b16 %v140
    %v266 = vunpack.c.h.b16 %v140
    %v267 = vunpack.c.l.b16 %v141
    %v268 = vunpack.c.h.b16 %v141
    %v269 = vunpack.c.l.b16 %v142
    %v270 = vunpack.c.h.b16 %v142
    %v271 = vunpack.c.l.b16 %v143
    %v272 = vunpack.c.h.b16 %v143
    %v273 = vunpack.c.l.b16 %v144
    %v274 = vunpack.c.h.b16 %v144
    %v275 = vunpack.c.l.b16 %v145
    %v276 = vunpack.c.h.b16 %v145
    %v277 = vunpack.c.l.b16 %v146
    %v278 = vunpack.c.h.b16 %v146
    %v279 = vpack.c.b16 %v263, %v247
    %v280 = vpack.c.b16 %v264, %v248
    %v281 = vpack.c.b16 %v265, %v249
    %v282 = vpack.c.b16 %v266, %v250
    %v283 = vpack.c.b16 %v267, %v251
    %v284 = vpack.c.b16 %v268, %v252
    %v285 = vpack.c.b16 %v269, %v253
    %v286 = vpack.c.b16 %v270, %v254
    %v287 = vpack.c.b16 %v271, %v255
    %v288 = vpack.c.b16 %v272, %v256
    %v289 = vpack.c.b16 %v273, %v257
    %v290 = vpack.c.b16 %v274, %v258
    %v291 = vpack.c.b16 %v275, %v259
    %v292 = vpack.c.b16 %v276, %v260
    %v293 = vpack.c.b16 %v277, %v261
    %v294 = vpack.c.b16 %v278, %v262
    %vm311 = vcmask 130048
    %v313 = vsel %vm311, %v130, 0
    %315 = vmatprep.subr.bf16.mxu0 %v280
    %316 = vmatpush1.bf16.msra.mxu0 %v279
    %317 = vmatprep.subr.bf16.mxu0 0
    %318 = vmatpush1.bf16.msra.mxu0 0
    %319 = vmatprep.subr.bf16.mxu0 0
    %320 = vmatpush1.bf16.msra.mxu0 0
    %321 = vmatprep.subr.bf16.mxu0 0
    %322 = vmatpush1.bf16.msra.mxu0 0
    %323 = vmatprep.subr.bf16.mxu0 0
    %324 = vmatpush1.bf16.msra.mxu0 0
    %325 = vmatprep.subr.bf16.mxu0 0
    %326 = vmatpush1.bf16.msra.mxu0 0
    %327 = vmatprep.subr.bf16.mxu0 0
    %328 = vmatpush1.bf16.msra.mxu0 0
    %329 = vmatprep.subr.bf16.mxu0 0
    %330 = vmatpush1.bf16.msra.mxu0 0
    %331 = vmatprep.subr.bf16.mxu0 0
    %332 = vmatpush1.bf16.msra.mxu0 0
    %333 = vmatprep.subr.bf16.mxu0 0
    %334 = vmatpush1.bf16.msra.mxu0 0
    %335 = vmatprep.subr.bf16.mxu0 0
    %336 = vmatpush1.bf16.msra.mxu0 0
    %337 = vmatprep.subr.bf16.mxu0 0
    %338 = vmatpush1.bf16.msra.mxu0 0
    %339 = vmatprep.subr.bf16.mxu0 0
    %340 = vmatpush1.bf16.msra.mxu0 0
    %341 = vmatprep.subr.bf16.mxu0 0
    %342 = vmatpush1.bf16.msra.mxu0 0
    %343 = vmatprep.subr.bf16.mxu0 0
    %344 = vmatpush1.bf16.msra.mxu0 0
    %345 = vmatprep.subr.bf16.mxu0 0
    %346 = vmatpush1.bf16.msra.mxu0 0
    %347 = vmatprep.mubr.bf16.mxu0 0
    %348 = vmatmul.mubr.bf16.gmra.mrb[0].mxu0 %v313
    %v349 = vpop.f32.mrb[0].mxu0
    %v350 = vadd.f32 %v154, %v349
    %v351 = vpop.f32.mrb[0].mxu0
    %v352 = vadd.f32 %v158, %v351
    %v353 = vpop.f32.mrb[0].mxu0
    %v354 = vpop.f32.mrb[0].mxu0
    %355 = vdwg.mxu0
    %356 = vmatprep.subr.bf16.mxu0 %v282
    %357 = vmatpush1.bf16.msra.mxu0 %v281
    %358 = vmatprep.subr.bf16.mxu0 0
    %359 = vmatpush1.bf16.msra.mxu0 0
    %360 = vmatprep.subr.bf16.mxu0 0
    %361 = vmatpush1.bf16.msra.mxu0 0
    %362 = vmatprep.subr.bf16.mxu0 0
    %363 = vmatpush1.bf16.msra.mxu0 0
    %364 = vmatprep.subr.bf16.mxu0 0
    %365 = vmatpush1.bf16.msra.mxu0 0
    %366 = vmatprep.subr.bf16.mxu0 0
    %367 = vmatpush1.bf16.msra.mxu0 0
    %368 = vmatprep.subr.bf16.mxu0 0
    %369 = vmatpush1.bf16.msra.mxu0 0
    %370 = vmatprep.subr.bf16.mxu0 0
    %371 = vmatpush1.bf16.msra.mxu0 0
    %372 = vmatprep.subr.bf16.mxu0 0
    %373 = vmatpush1.bf16.msra.mxu0 0
    %374 = vmatprep.subr.bf16.mxu0 0
    %375 = vmatpush1.bf16.msra.mxu0 0
    %376 = vmatprep.subr.bf16.mxu0 0
    %377 = vmatpush1.bf16.msra.mxu0 0
    %378 = vmatprep.subr.bf16.mxu0 0
    %379 = vmatpush1.bf16.msra.mxu0 0
    %380 = vmatprep.subr.bf16.mxu0 0
    %381 = vmatpush1.bf16.msra.mxu0 0
    %382 = vmatprep.subr.bf16.mxu0 0
    %383 = vmatpush1.bf16.msra.mxu0 0
    %384 = vmatprep.subr.bf16.mxu0 0
    %385 = vmatpush1.bf16.msra.mxu0 0
    %386 = vmatprep.subr.bf16.mxu0 0
    %387 = vmatpush1.bf16.msra.mxu0 0
    %388 = vmatprep.mubr.bf16.mxu0 0
    %389 = vmatmul.mubr.bf16.gmra.mrb[0].mxu0 %v313
    %v390 = vpop.f32.mrb[0].mxu0
    %v391 = vadd.f32 %v162, %v390
    %v392 = vpop.f32.mrb[0].mxu0
    %v393 = vadd.f32 %v166, %v392
    %v394 = vpop.f32.mrb[0].mxu0
    %v395 = vpop.f32.mrb[0].mxu0
    %396 = vdwg.mxu0
    %397 = vmatprep.subr.bf16.mxu0 %v284
    %398 = vmatpush1.bf16.msra.mxu0 %v283
    %399 = vmatprep.subr.bf16.mxu0 0
    %400 = vmatpush1.bf16.msra.mxu0 0
    %401 = vmatprep.subr.bf16.mxu0 0
    %402 = vmatpush1.bf16.msra.mxu0 0
    %403 = vmatprep.subr.bf16.mxu0 0
    %404 = vmatpush1.bf16.msra.mxu0 0
    %405 = vmatprep.subr.bf16.mxu0 0
    %406 = vmatpush1.bf16.msra.mxu0 0
    %407 = vmatprep.subr.bf16.mxu0 0
    %408 = vmatpush1.bf16.msra.mxu0 0
    %409 = vmatprep.subr.bf16.mxu0 0
    %410 = vmatpush1.bf16.msra.mxu0 0
    %411 = vmatprep.subr.bf16.mxu0 0
    %412 = vmatpush1.bf16.msra.mxu0 0
    %413 = vmatprep.subr.bf16.mxu0 0
    %414 = vmatpush1.bf16.msra.mxu0 0
    %415 = vmatprep.subr.bf16.mxu0 0
    %416 = vmatpush1.bf16.msra.mxu0 0
    %417 = vmatprep.subr.bf16.mxu0 0
    %418 = vmatpush1.bf16.msra.mxu0 0
    %419 = vmatprep.subr.bf16.mxu0 0
    %420 = vmatpush1.bf16.msra.mxu0 0
    %421 = vmatprep.subr.bf16.mxu0 0
    %422 = vmatpush1.bf16.msra.mxu0 0
    %423 = vmatprep.subr.bf16.mxu0 0
    %424 = vmatpush1.bf16.msra.mxu0 0
    %425 = vmatprep.subr.bf16.mxu0 0
    %426 = vmatpush1.bf16.msra.mxu0 0
    %427 = vmatprep.subr.bf16.mxu0 0
    %428 = vmatpush1.bf16.msra.mxu0 0
    %429 = vmatprep.mubr.bf16.mxu0 0
    %430 = vmatmul.mubr.bf16.gmra.mrb[0].mxu0 %v313
    %v431 = vpop.f32.mrb[0].mxu0
    %v432 = vadd.f32 %v170, %v431
    %v433 = vpop.f32.mrb[0].mxu0
    %v434 = vadd.f32 %v174, %v433
    %v435 = vpop.f32.mrb[0].mxu0
    %v436 = vpop.f32.mrb[0].mxu0
    %437 = vdwg.mxu0
    %438 = vmatprep.subr.bf16.mxu0 %v286
    %439 = vmatpush1.bf16.msra.mxu0 %v285
    %440 = vmatprep.subr.bf16.mxu0 0
    %441 = vmatpush1.bf16.msra.mxu0 0
    %442 = vmatprep.subr.bf16.mxu0 0
    %443 = vmatpush1.bf16.msra.mxu0 0
    %444 = vmatprep.subr.bf16.mxu0 0
    %445 = vmatpush1.bf16.msra.mxu0 0
    %446 = vmatprep.subr.bf16.mxu0 0
    %447 = vmatpush1.bf16.msra.mxu0 0
    %448 = vmatprep.subr.bf16.mxu0 0
    %449 = vmatpush1.bf16.msra.mxu0 0
    %450 = vmatprep.subr.bf16.mxu0 0
    %451 = vmatpush1.bf16.msra.mxu0 0
    %452 = vmatprep.subr.bf16.mxu0 0
    %453 = vmatpush1.bf16.msra.mxu0 0
    %454 = vmatprep.subr.bf16.mxu0 0
    %455 = vmatpush1.bf16.msra.mxu0 0
    %456 = vmatprep.subr.bf16.mxu0 0
    %457 = vmatpush1.bf16.msra.mxu0 0
    %458 = vmatprep.subr.bf16.mxu0 0
    %459 = vmatpush1.bf16.msra.mxu0 0
    %460 = vmatprep.subr.bf16.mxu0 0
    %461 = vmatpush1.bf16.msra.mxu0 0
    %462 = vmatprep.subr.bf16.mxu0 0
    %463 = vmatpush1.bf16.msra.mxu0 0
    %464 = vmatprep.subr.bf16.mxu0 0
    %465 = vmatpush1.bf16.msra.mxu0 0
    %466 = vmatprep.subr.bf16.mxu0 0
    %467 = vmatpush1.bf16.msra.mxu0 0
    %468 = vmatprep.subr.bf16.mxu0 0
    %469 = vmatpush1.bf16.msra.mxu0 0
    %470 = vmatprep.mubr.bf16.mxu0 0
    %471 = vmatmul.mubr.bf16.gmra.mrb[0].mxu0 %v313
    %v472 = vpop.f32.mrb[0].mxu0
    %v473 = vadd.f32 %v178, %v472
    %v474 = vpop.f32.mrb[0].mxu0
    %v475 = vadd.f32 %v182, %v474
    %v476 = vpop.f32.mrb[0].mxu0
    %v477 = vpop.f32.mrb[0].mxu0
    %478 = vdwg.mxu0
    %479 = vmatprep.subr.bf16.mxu0 %v288
    %480 = vmatpush1.bf16.msra.mxu0 %v287
    %481 = vmatprep.subr.bf16.mxu0 0
    %482 = vmatpush1.bf16.msra.mxu0 0
    %483 = vmatprep.subr.bf16.mxu0 0
    %484 = vmatpush1.bf16.msra.mxu0 0
    %485 = vmatprep.subr.bf16.mxu0 0
    %486 = vmatpush1.bf16.msra.mxu0 0
    %487 = vmatprep.subr.bf16.mxu0 0
    %488 = vmatpush1.bf16.msra.mxu0 0
    %489 = vmatprep.subr.bf16.mxu0 0
    %490 = vmatpush1.bf16.msra.mxu0 0
    %491 = vmatprep.subr.bf16.mxu0 0
    %492 = vmatpush1.bf16.msra.mxu0 0
    %493 = vmatprep.subr.bf16.mxu0 0
    %494 = vmatpush1.bf16.msra.mxu0 0
    %495 = vmatprep.subr.bf16.mxu0 0
    %496 = vmatpush1.bf16.msra.mxu0 0
    %497 = vmatprep.subr.bf16.mxu0 0
    %498 = vmatpush1.bf16.msra.mxu0 0
    %499 = vmatprep.subr.bf16.mxu0 0
    %500 = vmatpush1.bf16.msra.mxu0 0
    %501 = vmatprep.subr.bf16.mxu0 0
    %502 = vmatpush1.bf16.msra.mxu0 0
    %503 = vmatprep.subr.bf16.mxu0 0
    %504 = vmatpush1.bf16.msra.mxu0 0
    %505 = vmatprep.subr.bf16.mxu0 0
    %506 = vmatpush1.bf16.msra.mxu0 0
    %507 = vmatprep.subr.bf16.mxu0 0
    %508 = vmatpush1.bf16.msra.mxu0 0
    %509 = vmatprep.subr.bf16.mxu0 0
    %510 = vmatpush1.bf16.msra.mxu0 0
    %511 = vmatprep.mubr.bf16.mxu0 0
    %512 = vmatmul.mubr.bf16.gmra.mrb[0].mxu0 %v313
    %v513 = vpop.f32.mrb[0].mxu0
    %v514 = vadd.f32 %v186, %v513
    %v515 = vpop.f32.mrb[0].mxu0
    %v516 = vadd.f32 %v190, %v515
    %v517 = vpop.f32.mrb[0].mxu0
    %v518 = vpop.f32.mrb[0].mxu0
    %519 = vdwg.mxu0
    %520 = vmatprep.subr.bf16.mxu0 %v290
    %521 = vmatpush1.bf16.msra.mxu0 %v289
    %522 = vmatprep.subr.bf16.mxu0 0
    %523 = vmatpush1.bf16.msra.mxu0 0
    %524 = vmatprep.subr.bf16.mxu0 0
    %525 = vmatpush1.bf16.msra.mxu0 0
    %526 = vmatprep.subr.bf16.mxu0 0
    %527 = vmatpush1.bf16.msra.mxu0 0
    %528 = vmatprep.subr.bf16.mxu0 0
    %529 = vmatpush1.bf16.msra.mxu0 0
    %530 = vmatprep.subr.bf16.mxu0 0
    %531 = vmatpush1.bf16.msra.mxu0 0
    %532 = vmatprep.subr.bf16.mxu0 0
    %533 = vmatpush1.bf16.msra.mxu0 0
    %534 = vmatprep.subr.bf16.mxu0 0
    %535 = vmatpush1.bf16.msra.mxu0 0
    %536 = vmatprep.subr.bf16.mxu0 0
    %537 = vmatpush1.bf16.msra.mxu0 0
    %538 = vmatprep.subr.bf16.mxu0 0
    %539 = vmatpush1.bf16.msra.mxu0 0
    %540 = vmatprep.subr.bf16.mxu0 0
    %541 = vmatpush1.bf16.msra.mxu0 0
    %542 = vmatprep.subr.bf16.mxu0 0
    %543 = vmatpush1.bf16.msra.mxu0 0
    %544 = vmatprep.subr.bf16.mxu0 0
    %545 = vmatpush1.bf16.msra.mxu0 0
    %546 = vmatprep.subr.bf16.mxu0 0
    %547 = vmatpush1.bf16.msra.mxu0 0
    %548 = vmatprep.subr.bf16.mxu0 0
    %549 = vmatpush1.bf16.msra.mxu0 0
    %550 = vmatprep.subr.bf16.mxu0 0
    %551 = vmatpush1.bf16.msra.mxu0 0
    %552 = vmatprep.mubr.bf16.mxu0 0
    %553 = vmatmul.mubr.bf16.gmra.mrb[0].mxu0 %v313
    %v554 = vpop.f32.mrb[0].mxu0
    %v555 = vadd.f32 %v194, %v554
    %v556 = vpop.f32.mrb[0].mxu0
    %v557 = vadd.f32 %v198, %v556
    %v558 = vpop.f32.mrb[0].mxu0
    %v559 = vpop.f32.mrb[0].mxu0
    %560 = vdwg.mxu0
    %561 = vmatprep.subr.bf16.mxu0 %v292
    %562 = vmatpush1.bf16.msra.mxu0 %v291
    %563 = vmatprep.subr.bf16.mxu0 0
    %564 = vmatpush1.bf16.msra.mxu0 0
    %565 = vmatprep.subr.bf16.mxu0 0
    %566 = vmatpush1.bf16.msra.mxu0 0
    %567 = vmatprep.subr.bf16.mxu0 0
    %568 = vmatpush1.bf16.msra.mxu0 0
    %569 = vmatprep.subr.bf16.mxu0 0
    %570 = vmatpush1.bf16.msra.mxu0 0
    %571 = vmatprep.subr.bf16.mxu0 0
    %572 = vmatpush1.bf16.msra.mxu0 0
    %573 = vmatprep.subr.bf16.mxu0 0
    %574 = vmatpush1.bf16.msra.mxu0 0
    %575 = vmatprep.subr.bf16.mxu0 0
    %576 = vmatpush1.bf16.msra.mxu0 0
    %577 = vmatprep.subr.bf16.mxu0 0
    %578 = vmatpush1.bf16.msra.mxu0 0
    %579 = vmatprep.subr.bf16.mxu0 0
    %580 = vmatpush1.bf16.msra.mxu0 0
    %581 = vmatprep.subr.bf16.mxu0 0
    %582 = vmatpush1.bf16.msra.mxu0 0
    %583 = vmatprep.subr.bf16.mxu0 0
    %584 = vmatpush1.bf16.msra.mxu0 0
    %585 = vmatprep.subr.bf16.mxu0 0
    %586 = vmatpush1.bf16.msra.mxu0 0
    %587 = vmatprep.subr.bf16.mxu0 0
    %588 = vmatpush1.bf16.msra.mxu0 0
    %589 = vmatprep.subr.bf16.mxu0 0
    %590 = vmatpush1.bf16.msra.mxu0 0
    %591 = vmatprep.subr.bf16.mxu0 0
    %592 = vmatpush1.bf16.msra.mxu0 0
    %593 = vmatprep.mubr.bf16.mxu0 0
    %594 = vmatmul.mubr.bf16.gmra.mrb[0].mxu0 %v313
    %v595 = vpop.f32.mrb[0].mxu0
    %v596 = vadd.f32 %v202, %v595
    %v597 = vpop.f32.mrb[0].mxu0
    %v598 = vadd.f32 %v206, %v597
    %v599 = vpop.f32.mrb[0].mxu0
    %v600 = vpop.f32.mrb[0].mxu0
    %601 = vdwg.mxu0
    %602 = vmatprep.subr.bf16.mxu0 %v294
    %603 = vmatpush1.bf16.msra.mxu0 %v293
    %604 = vmatprep.subr.bf16.mxu0 0
    %605 = vmatpush1.bf16.msra.mxu0 0
    %606 = vmatprep.subr.bf16.mxu0 0
    %607 = vmatpush1.bf16.msra.mxu0 0
    %608 = vmatprep.subr.bf16.mxu0 0
    %609 = vmatpush1.bf16.msra.mxu0 0
    %610 = vmatprep.subr.bf16.mxu0 0
    %611 = vmatpush1.bf16.msra.mxu0 0
    %612 = vmatprep.subr.bf16.mxu0 0
    %613 = vmatpush1.bf16.msra.mxu0 0
    %614 = vmatprep.subr.bf16.mxu0 0
    %615 = vmatpush1.bf16.msra.mxu0 0
    %616 = vmatprep.subr.bf16.mxu0 0
    %617 = vmatpush1.bf16.msra.mxu0 0
    %618 = vmatprep.subr.bf16.mxu0 0
    %619 = vmatpush1.bf16.msra.mxu0 0
    %620 = vmatprep.subr.bf16.mxu0 0
    %621 = vmatpush1.bf16.msra.mxu0 0
    %622 = vmatprep.subr.bf16.mxu0 0
    %623 = vmatpush1.bf16.msra.mxu0 0
    %624 = vmatprep.subr.bf16.mxu0 0
    %625 = vmatpush1.bf16.msra.mxu0 0
    %626 = vmatprep.subr.bf16.mxu0 0
    %627 = vmatpush1.bf16.msra.mxu0 0
    %628 = vmatprep.subr.bf16.mxu0 0
    %629 = vmatpush1.bf16.msra.mxu0 0
    %630 = vmatprep.subr.bf16.mxu0 0
    %631 = vmatpush1.bf16.msra.mxu0 0
    %632 = vmatprep.subr.bf16.mxu0 0
    %633 = vmatpush1.bf16.msra.mxu0 0
    %634 = vmatprep.mubr.bf16.mxu0 0
    %635 = vmatmul.mubr.bf16.gmra.mrb[0].mxu0 %v313
    %v636 = vpop.f32.mrb[0].mxu0
    %v637 = vadd.f32 %v210, %v636
    %v638 = vpop.f32.mrb[0].mxu0
    %v639 = vadd.f32 %v214, %v638
    %v640 = vpop.f32.mrb[0].mxu0
    %v641 = vpop.f32.mrb[0].mxu0
    %642 = vdwg.mxu0
    %v643 = vld [vmem:[#allocation8] sm:$0xff]
    %v644 = vld [vmem:[#allocation8 + $0x8] sm:$0xff]
    %v645 = vld [vmem:[%s4] sm:$0xff]
    %v646 = vld [vmem:[%s4 + $0x8] sm:$0xff]
    %v647 = vadd.f32 %v350, %v352
    %v648 = vadd.f32 %v647, %v391
    %v649 = vadd.f32 %v648, %v393
    %v650 = vadd.f32 %v649, %v432
    %v651 = vadd.f32 %v650, %v434
    %v652 = vadd.f32 %v651, %v473
    %v653 = vadd.f32 %v652, %v475
    %v654 = vadd.f32 %v653, %v514
    %v655 = vadd.f32 %v654, %v516
    %v656 = vadd.f32 %v655, %v555
    %v657 = vadd.f32 %v656, %v557
    %v658 = vadd.f32 %v657, %v596
    %v659 = vadd.f32 %v658, %v598
    %v660 = vadd.f32 %v659, %v637
    %v661 = vadd.f32 %v660, %v639
    %662 = vadd.xlane.f32.xlu0 %v661
    %v663 = vpop.xlane.xlu0 %662
    %v664 = vmul.f32 %v350, %v350
    %v665 = vmul.f32 %v352, %v352
    %v666 = vmul.f32 %v391, %v391
    %v667 = vmul.f32 %v393, %v393
    %v668 = vmul.f32 %v432, %v432
    %v669 = vmul.f32 %v434, %v434
    %v670 = vmul.f32 %v473, %v473
    %v671 = vmul.f32 %v475, %v475
    %v672 = vmul.f32 %v514, %v514
    %v673 = vmul.f32 %v516, %v516
    %v674 = vmul.f32 %v555, %v555
    %v675 = vmul.f32 %v557, %v557
    %v676 = vmul.f32 %v596, %v596
    %v677 = vmul.f32 %v598, %v598
    %v678 = vmul.f32 %v637, %v637
    %v679 = vmul.f32 %v639, %v639
    %v680 = vadd.f32 %v664, %v665
    %v681 = vadd.f32 %v680, %v666
    %v682 = vadd.f32 %v681, %v667
    %v683 = vadd.f32 %v682, %v668
    %v684 = vadd.f32 %v683, %v669
    %v685 = vadd.f32 %v684, %v670
    %v686 = vadd.f32 %v685, %v671
    %v687 = vadd.f32 %v686, %v672
    %v688 = vadd.f32 %v687, %v673
    %v689 = vadd.f32 %v688, %v674
    %v690 = vadd.f32 %v689, %v675
    %v691 = vadd.f32 %v690, %v676
    %v692 = vadd.f32 %v691, %v677
    %v693 = vadd.f32 %v692, %v678
    %v694 = vadd.f32 %v693, %v679
    %695 = vadd.xlane.f32.xlu0 %v694
    %v696 = vpop.xlane.xlu0 %695
    %v697 = vmul.f32 %v663, 0.00048828125
    %v698 = vmul.f32 %v696, 0.00048828125
    %v699 = vmul.f32 %v697, %v697
    %v700 = vsub.f32 %v698, %v699
    %v701 = vmax.f32 %v700, 0.0
    %v702 = vadd.f32 %v701, 1e-05
    %v703 = vrsqrt.pop %v702
    %v704 = vsub.f32 %v350, %v697
    %v705 = vsub.f32 %v352, %v697
    %v706 = vsub.f32 %v391, %v697
    %v707 = vsub.f32 %v393, %v697
    %v708 = vsub.f32 %v432, %v697
    %v709 = vsub.f32 %v434, %v697
    %v710 = vsub.f32 %v473, %v697
    %v711 = vsub.f32 %v475, %v697
    %v712 = vsub.f32 %v514, %v697
    %v713 = vsub.f32 %v516, %v697
    %v714 = vsub.f32 %v555, %v697
    %v715 = vsub.f32 %v557, %v697
    %v716 = vsub.f32 %v596, %v697
    %v717 = vsub.f32 %v598, %v697
    %v718 = vsub.f32 %v637, %v697
    %v719 = vsub.f32 %v639, %v697
    %v720 = vmul.f32 %v704, %v703
    %v721 = vmul.f32 %v705, %v703
    %v722 = vmul.f32 %v706, %v703
    %v723 = vmul.f32 %v707, %v703
    %v724 = vmul.f32 %v708, %v703
    %v725 = vmul.f32 %v709, %v703
    %v726 = vmul.f32 %v710, %v703
    %v727 = vmul.f32 %v711, %v703
    %v728 = vmul.f32 %v712, %v703
    %v729 = vmul.f32 %v713, %v703
    %v730 = vmul.f32 %v714, %v703
    %v731 = vmul.f32 %v715, %v703
    %v732 = vmul.f32 %v716, %v703
    %v733 = vmul.f32 %v717, %v703
    %v734 = vmul.f32 %v718, %v703
    %v735 = vmul.f32 %v719, %v703
    %v738 = vlaneseq
    %v739 = vshrl.u32 %v738, 7
    %v740 = vsub.s32 0, %v739
    %v741 = vrot.slane %v643, %v740
    %v742 = vlaneseq
    %v743 = vshrl.u32 %v742, 7
    %v744 = vsub.s32 1, %v743
    %v745 = vrot.slane %v643, %v744
    %v746 = vlaneseq
    %v747 = vshrl.u32 %v746, 7
    %v748 = vsub.s32 2, %v747
    %v749 = vrot.slane %v643, %v748
    %v750 = vlaneseq
    %v751 = vshrl.u32 %v750, 7
    %v752 = vsub.s32 3, %v751
    %v753 = vrot.slane %v643, %v752
    %v754 = vlaneseq
    %v755 = vshrl.u32 %v754, 7
    %v756 = vsub.s32 4, %v755
    %v757 = vrot.slane %v643, %v756
    %v758 = vlaneseq
    %v759 = vshrl.u32 %v758, 7
    %v760 = vsub.s32 5, %v759
    %v761 = vrot.slane %v643, %v760
    %v762 = vlaneseq
    %v763 = vshrl.u32 %v762, 7
    %v764 = vsub.s32 6, %v763
    %v765 = vrot.slane %v643, %v764
    %v766 = vlaneseq
    %v767 = vshrl.u32 %v766, 7
    %v768 = vsub.s32 7, %v767
    %v769 = vrot.slane %v643, %v768
    %v770 = vlaneseq
    %v771 = vshrl.u32 %v770, 7
    %v772 = vsub.s32 0, %v771
    %v773 = vrot.slane %v644, %v772
    %v774 = vlaneseq
    %v775 = vshrl.u32 %v774, 7
    %v776 = vsub.s32 1, %v775
    %v777 = vrot.slane %v644, %v776
    %v778 = vlaneseq
    %v779 = vshrl.u32 %v778, 7
    %v780 = vsub.s32 2, %v779
    %v781 = vrot.slane %v644, %v780
    %v782 = vlaneseq
    %v783 = vshrl.u32 %v782, 7
    %v784 = vsub.s32 3, %v783
    %v785 = vrot.slane %v644, %v784
    %v786 = vlaneseq
    %v787 = vshrl.u32 %v786, 7
    %v788 = vsub.s32 4, %v787
    %v789 = vrot.slane %v644, %v788
    %v790 = vlaneseq
    %v791 = vshrl.u32 %v790, 7
    %v792 = vsub.s32 5, %v791
    %v793 = vrot.slane %v644, %v792
    %v794 = vlaneseq
    %v795 = vshrl.u32 %v794, 7
    %v796 = vsub.s32 6, %v795
    %v797 = vrot.slane %v644, %v796
    %v798 = vlaneseq
    %v799 = vshrl.u32 %v798, 7
    %v800 = vsub.s32 7, %v799
    %v801 = vrot.slane %v644, %v800
    %v818 = vmul.f32 %v720, %v741
    %v819 = vmul.f32 %v721, %v745
    %v820 = vmul.f32 %v722, %v749
    %v821 = vmul.f32 %v723, %v753
    %v822 = vmul.f32 %v724, %v757
    %v823 = vmul.f32 %v725, %v761
    %v824 = vmul.f32 %v726, %v765
    %v825 = vmul.f32 %v727, %v769
    %v826 = vmul.f32 %v728, %v773
    %v827 = vmul.f32 %v729, %v777
    %v828 = vmul.f32 %v730, %v781
    %v829 = vmul.f32 %v731, %v785
    %v830 = vmul.f32 %v732, %v789
    %v831 = vmul.f32 %v733, %v793
    %v832 = vmul.f32 %v734, %v797
    %v833 = vmul.f32 %v735, %v801
    %v836 = vlaneseq
    %v837 = vshrl.u32 %v836, 7
    %v838 = vsub.s32 0, %v837
    %v839 = vrot.slane %v645, %v838
    %v840 = vlaneseq
    %v841 = vshrl.u32 %v840, 7
    %v842 = vsub.s32 1, %v841
    %v843 = vrot.slane %v645, %v842
    %v844 = vlaneseq
    %v845 = vshrl.u32 %v844, 7
    %v846 = vsub.s32 2, %v845
    %v847 = vrot.slane %v645, %v846
    %v848 = vlaneseq
    %v849 = vshrl.u32 %v848, 7
    %v850 = vsub.s32 3, %v849
    %v851 = vrot.slane %v645, %v850
    %v852 = vlaneseq
    %v853 = vshrl.u32 %v852, 7
    %v854 = vsub.s32 4, %v853
    %v855 = vrot.slane %v645, %v854
    %v856 = vlaneseq
    %v857 = vshrl.u32 %v856, 7
    %v858 = vsub.s32 5, %v857
    %v859 = vrot.slane %v645, %v858
    %v860 = vlaneseq
    %v861 = vshrl.u32 %v860, 7
    %v862 = vsub.s32 6, %v861
    %v863 = vrot.slane %v645, %v862
    %v864 = vlaneseq
    %v865 = vshrl.u32 %v864, 7
    %v866 = vsub.s32 7, %v865
    %v867 = vrot.slane %v645, %v866
    %v868 = vlaneseq
    %v869 = vshrl.u32 %v868, 7
    %v870 = vsub.s32 0, %v869
    %v871 = vrot.slane %v646, %v870
    %v872 = vlaneseq
    %v873 = vshrl.u32 %v872, 7
    %v874 = vsub.s32 1, %v873
    %v875 = vrot.slane %v646, %v874
    %v876 = vlaneseq
    %v877 = vshrl.u32 %v876, 7
    %v878 = vsub.s32 2, %v877
    %v879 = vrot.slane %v646, %v878
    %v880 = vlaneseq
    %v881 = vshrl.u32 %v880, 7
    %v882 = vsub.s32 3, %v881
    %v883 = vrot.slane %v646, %v882
    %v884 = vlaneseq
    %v885 = vshrl.u32 %v884, 7
    %v886 = vsub.s32 4, %v885
    %v887 = vrot.slane %v646, %v886
    %v888 = vlaneseq
    %v889 = vshrl.u32 %v888, 7
    %v890 = vsub.s32 5, %v889
    %v891 = vrot.slane %v646, %v890
    %v892 = vlaneseq
    %v893 = vshrl.u32 %v892, 7
    %v894 = vsub.s32 6, %v893
    %v895 = vrot.slane %v646, %v894
    %v896 = vlaneseq
    %v897 = vshrl.u32 %v896, 7
    %v898 = vsub.s32 7, %v897
    %v899 = vrot.slane %v646, %v898
    %v916 = vadd.f32 %v818, %v839
    %v917 = vadd.f32 %v819, %v843
    %v918 = vadd.f32 %v820, %v847
    %v919 = vadd.f32 %v821, %v851
    %v920 = vadd.f32 %v822, %v855
    %v921 = vadd.f32 %v823, %v859
    %v922 = vadd.f32 %v824, %v863
    %v923 = vadd.f32 %v825, %v867
    %v924 = vadd.f32 %v826, %v871
    %v925 = vadd.f32 %v827, %v875
    %v926 = vadd.f32 %v828, %v879
    %v927 = vadd.f32 %v829, %v883
    %v928 = vadd.f32 %v830, %v887
    %v929 = vadd.f32 %v831, %v891
    %v930 = vadd.f32 %v832, %v895
    %v931 = vadd.f32 %v833, %v899
    %v932 = vtanh.pop %v916
    %v933 = vtanh.pop %v917
    %v934 = vtanh.pop %v918
    %v935 = vtanh.pop %v919
    %v936 = vtanh.pop %v920
    %v937 = vtanh.pop %v921
    %v938 = vtanh.pop %v922
    %v939 = vtanh.pop %v923
    %v940 = vtanh.pop %v924
    %v941 = vtanh.pop %v925
    %v942 = vtanh.pop %v926
    %v943 = vtanh.pop %v927
    %v944 = vtanh.pop %v928
    %v945 = vtanh.pop %v929
    %v946 = vtanh.pop %v930
    %v947 = vtanh.pop %v931
    %v948 = vpack.c.bf16 %v932, %v932
    %v949 = vpack.c.bf16 %v933, %v933
    %v950 = vpack.c.bf16 %v934, %v934
    %v951 = vpack.c.bf16 %v935, %v935
    %v952 = vpack.c.bf16 %v936, %v936
    %v953 = vpack.c.bf16 %v937, %v937
    %v954 = vpack.c.bf16 %v938, %v938
    %v955 = vpack.c.bf16 %v939, %v939
    %v956 = vpack.c.bf16 %v940, %v940
    %v957 = vpack.c.bf16 %v941, %v941
    %v958 = vpack.c.bf16 %v942, %v942
    %v959 = vpack.c.bf16 %v943, %v943
    %v960 = vpack.c.bf16 %v944, %v944
    %v961 = vpack.c.bf16 %v945, %v945
    %v962 = vpack.c.bf16 %v946, %v946
    %v963 = vpack.c.bf16 %v947, %v947
    %v964 = vld [vmem:[#allocation10] sm:$0xf]
    %v965 = vld [vmem:[#allocation10 + $0x4] sm:$0xf]
    %v966 = vld [vmem:[#allocation10 + $0x8] sm:$0xf]
    %v967 = vld [vmem:[#allocation10 + $0xc] sm:$0xf]
    %v968 = vld [vmem:[#allocation10 + $0x10] sm:$0xf]
    %v969 = vld [vmem:[#allocation10 + $0x14] sm:$0xf]
    %v970 = vld [vmem:[#allocation10 + $0x18] sm:$0xf]
    %v971 = vld [vmem:[#allocation10 + $0x1c] sm:$0xf]
    %v972 = vld [vmem:[#allocation10 + $0x20] sm:$0xf]
    %v973 = vld [vmem:[#allocation10 + $0x24] sm:$0xf]
    %v974 = vld [vmem:[#allocation10 + $0x28] sm:$0xf]
    %v975 = vld [vmem:[#allocation10 + $0x2c] sm:$0xf]
    %v976 = vld [vmem:[#allocation10 + $0x30] sm:$0xf]
    %v977 = vld [vmem:[#allocation10 + $0x34] sm:$0xf]
    %v978 = vld [vmem:[#allocation10 + $0x38] sm:$0xf]
    %v979 = vld [vmem:[#allocation10 + $0x3c] sm:$0xf]
    %v980 = vld [vmem:[#allocation10 + $0x40] sm:$0xf]
    %v981 = vld [vmem:[#allocation10 + $0x44] sm:$0xf]
    %v982 = vld [vmem:[#allocation10 + $0x48] sm:$0xf]
    %v983 = vld [vmem:[#allocation10 + $0x4c] sm:$0xf]
    %v984 = vld [vmem:[#allocation10 + $0x50] sm:$0xf]
    %v985 = vld [vmem:[#allocation10 + $0x54] sm:$0xf]
    %v986 = vld [vmem:[#allocation10 + $0x58] sm:$0xf]
    %v987 = vld [vmem:[#allocation10 + $0x5c] sm:$0xf]
    %v988 = vld [vmem:[#allocation10 + $0x60] sm:$0xf]
    %v989 = vld [vmem:[#allocation10 + $0x64] sm:$0xf]
    %v990 = vld [vmem:[#allocation10 + $0x68] sm:$0xf]
    %v991 = vld [vmem:[#allocation10 + $0x6c] sm:$0xf]
    %v992 = vld [vmem:[#allocation10 + $0x70] sm:$0xf]
    %v993 = vld [vmem:[#allocation10 + $0x74] sm:$0xf]
    %v994 = vld [vmem:[#allocation10 + $0x78] sm:$0xf]
    %v995 = vld [vmem:[#allocation10 + $0x7c] sm:$0xf]
    %v996 = vld [vmem:[#allocation10 + $0x80] sm:$0xf]
    %v997 = vld [vmem:[#allocation10 + $0x84] sm:$0xf]
    %v998 = vld [vmem:[#allocation10 + $0x88] sm:$0xf]
    %v999 = vld [vmem:[#allocation10 + $0x8c] sm:$0xf]
    %v1000 = vld [vmem:[#allocation10 + $0x90] sm:$0xf]
    %v1001 = vld [vmem:[#allocation10 + $0x94] sm:$0xf]
    %v1002 = vld [vmem:[#allocation10 + $0x98] sm:$0xf]
    %v1003 = vld [vmem:[#allocation10 + $0x9c] sm:$0xf]
    %v1004 = vld [vmem:[#allocation10 + $0xa0] sm:$0xf]
    %v1005 = vld [vmem:[#allocation10 + $0xa4] sm:$0xf]
    %v1006 = vld [vmem:[#allocation10 + $0xa8] sm:$0xf]
    %v1007 = vld [vmem:[#allocation10 + $0xac] sm:$0xf]
    %v1008 = vld [vmem:[#allocation10 + $0xb0] sm:$0xf]
    %v1009 = vld [vmem:[#allocation10 + $0xb4] sm:$0xf]
    %v1010 = vld [vmem:[#allocation10 + $0xb8] sm:$0xf]
    %v1011 = vld [vmem:[#allocation10 + $0xbc] sm:$0xf]
    %v1012 = vld [vmem:[#allocation10 + $0xc0] sm:$0xf]
    %v1013 = vld [vmem:[#allocation10 + $0xc4] sm:$0xf]
    %v1014 = vld [vmem:[#allocation10 + $0xc8] sm:$0xf]
    %v1015 = vld [vmem:[#allocation10 + $0xcc] sm:$0xf]
    %v1016 = vld [vmem:[#allocation10 + $0xd0] sm:$0xf]
    %v1017 = vld [vmem:[#allocation10 + $0xd4] sm:$0xf]
    %v1018 = vld [vmem:[#allocation10 + $0xd8] sm:$0xf]
    %v1019 = vld [vmem:[#allocation10 + $0xdc] sm:$0xf]
    %v1020 = vld [vmem:[#allocation10 + $0xe0] sm:$0xf]
    %v1021 = vld [vmem:[#allocation10 + $0xe4] sm:$0xf]
    %v1022 = vld [vmem:[#allocation10 + $0xe8] sm:$0xf]
    %v1023 = vld [vmem:[#allocation10 + $0xec] sm:$0xf]
    %v1024 = vld [vmem:[#allocation10 + $0xf0] sm:$0xf]
    %v1025 = vld [vmem:[#allocation10 + $0xf4] sm:$0xf]
    %v1026 = vld [vmem:[#allocation10 + $0xf8] sm:$0xf]
    %v1027 = vld [vmem:[#allocation10 + $0xfc] sm:$0xf]
    %v1028 = vld [vmem:[#allocation10 + $0x100] sm:$0xf]
    %v1029 = vld [vmem:[#allocation10 + $0x104] sm:$0xf]
    %v1030 = vld [vmem:[#allocation10 + $0x108] sm:$0xf]
    %v1031 = vld [vmem:[#allocation10 + $0x10c] sm:$0xf]
    %v1032 = vld [vmem:[#allocation10 + $0x110] sm:$0xf]
    %v1033 = vld [vmem:[#allocation10 + $0x114] sm:$0xf]
    %v1034 = vld [vmem:[#allocation10 + $0x118] sm:$0xf]
    %v1035 = vld [vmem:[#allocation10 + $0x11c] sm:$0xf]
    %v1036 = vld [vmem:[#allocation10 + $0x120] sm:$0xf]
    %v1037 = vld [vmem:[#allocation10 + $0x124] sm:$0xf]
    %v1038 = vld [vmem:[#allocation10 + $0x128] sm:$0xf]
    %v1039 = vld [vmem:[#allocation10 + $0x12c] sm:$0xf]
    %v1040 = vld [vmem:[#allocation10 + $0x130] sm:$0xf]
    %v1041 = vld [vmem:[#allocation10 + $0x134] sm:$0xf]
    %v1042 = vld [vmem:[#allocation10 + $0x138] sm:$0xf]
    %v1043 = vld [vmem:[#allocation10 + $0x13c] sm:$0xf]
    %v1044 = vld [vmem:[#allocation10 + $0x140] sm:$0xf]
    %v1045 = vld [vmem:[#allocation10 + $0x144] sm:$0xf]
    %v1046 = vld [vmem:[#allocation10 + $0x148] sm:$0xf]
    %v1047 = vld [vmem:[#allocation10 + $0x14c] sm:$0xf]
    %v1048 = vld [vmem:[#allocation10 + $0x150] sm:$0xf]
    %v1049 = vld [vmem:[#allocation10 + $0x154] sm:$0xf]
    %v1050 = vld [vmem:[#allocation10 + $0x158] sm:$0xf]
    %v1051 = vld [vmem:[#allocation10 + $0x15c] sm:$0xf]
    %v1052 = vld [vmem:[#allocation10 + $0x160] sm:$0xf]
    %v1053 = vld [vmem:[#allocation10 + $0x164] sm:$0xf]
    %v1054 = vld [vmem:[#allocation10 + $0x168] sm:$0xf]
    %v1055 = vld [vmem:[#allocation10 + $0x16c] sm:$0xf]
    %v1056 = vld [vmem:[#allocation10 + $0x170] sm:$0xf]
    %v1057 = vld [vmem:[#allocation10 + $0x174] sm:$0xf]
    %v1058 = vld [vmem:[#allocation10 + $0x178] sm:$0xf]
    %v1059 = vld [vmem:[#allocation10 + $0x17c] sm:$0xf]
    %v1060 = vld [vmem:[#allocation10 + $0x180] sm:$0xf]
    %v1061 = vld [vmem:[#allocation10 + $0x184] sm:$0xf]
    %v1062 = vld [vmem:[#allocation10 + $0x188] sm:$0xf]
    %v1063 = vld [vmem:[#allocation10 + $0x18c] sm:$0xf]
    %v1064 = vld [vmem:[#allocation10 + $0x190] sm:$0xf]
    %v1065 = vld [vmem:[#allocation10 + $0x194] sm:$0xf]
    %v1066 = vld [vmem:[#allocation10 + $0x198] sm:$0xf]
    %v1067 = vld [vmem:[#allocation10 + $0x19c] sm:$0xf]
    %v1068 = vld [vmem:[#allocation10 + $0x1a0] sm:$0xf]
    %v1069 = vld [vmem:[#allocation10 + $0x1a4] sm:$0xf]
    %v1070 = vld [vmem:[#allocation10 + $0x1a8] sm:$0xf]
    %v1071 = vld [vmem:[#allocation10 + $0x1ac] sm:$0xf]
    %v1072 = vld [vmem:[#allocation10 + $0x1b0] sm:$0xf]
    %v1073 = vld [vmem:[#allocation10 + $0x1b4] sm:$0xf]
    %v1074 = vld [vmem:[#allocation10 + $0x1b8] sm:$0xf]
    %v1075 = vld [vmem:[#allocation10 + $0x1bc] sm:$0xf]
    %v1076 = vld [vmem:[#allocation10 + $0x1c0] sm:$0xf]
    %v1077 = vld [vmem:[#allocation10 + $0x1c4] sm:$0xf]
    %v1078 = vld [vmem:[#allocation10 + $0x1c8] sm:$0xf]
    %v1079 = vld [vmem:[#allocation10 + $0x1cc] sm:$0xf]
    %v1080 = vld [vmem:[#allocation10 + $0x1d0] sm:$0xf]
    %v1081 = vld [vmem:[#allocation10 + $0x1d4] sm:$0xf]
    %v1082 = vld [vmem:[#allocation10 + $0x1d8] sm:$0xf]
    %v1083 = vld [vmem:[#allocation10 + $0x1dc] sm:$0xf]
    %v1084 = vld [vmem:[#allocation10 + $0x1e0] sm:$0xf]
    %v1085 = vld [vmem:[#allocation10 + $0x1e4] sm:$0xf]
    %v1086 = vld [vmem:[#allocation10 + $0x1e8] sm:$0xf]
    %v1087 = vld [vmem:[#allocation10 + $0x1ec] sm:$0xf]
    %v1088 = vld [vmem:[#allocation10 + $0x1f0] sm:$0xf]
    %v1089 = vld [vmem:[#allocation10 + $0x1f4] sm:$0xf]
    %v1090 = vld [vmem:[#allocation10 + $0x1f8] sm:$0xf]
    %v1091 = vld [vmem:[#allocation10 + $0x1fc] sm:$0xf]
    %v1092 = vld [vmem:[#allocation10 + $0x200] sm:$0xf]
    %v1093 = vld [vmem:[#allocation10 + $0x204] sm:$0xf]
    %v1094 = vld [vmem:[#allocation10 + $0x208] sm:$0xf]
    %v1095 = vld [vmem:[#allocation10 + $0x20c] sm:$0xf]
    %v1096 = vld [vmem:[#allocation10 + $0x210] sm:$0xf]
    %v1097 = vld [vmem:[#allocation10 + $0x214] sm:$0xf]
    %v1098 = vld [vmem:[#allocation10 + $0x218] sm:$0xf]
    %v1099 = vld [vmem:[#allocation10 + $0x21c] sm:$0xf]
    %v1100 = vld [vmem:[#allocation10 + $0x220] sm:$0xf]
    %v1101 = vld [vmem:[#allocation10 + $0x224] sm:$0xf]
    %v1102 = vld [vmem:[#allocation10 + $0x228] sm:$0xf]
    %v1103 = vld [vmem:[#allocation10 + $0x22c] sm:$0xf]
    %v1104 = vld [vmem:[#allocation10 + $0x230] sm:$0xf]
    %v1105 = vld [vmem:[#allocation10 + $0x234] sm:$0xf]
    %v1106 = vld [vmem:[#allocation10 + $0x238] sm:$0xf]
    %v1107 = vld [vmem:[#allocation10 + $0x23c] sm:$0xf]
    %v1108 = vld [vmem:[#allocation10 + $0x240] sm:$0xf]
    %v1109 = vld [vmem:[#allocation10 + $0x244] sm:$0xf]
    %v1110 = vld [vmem:[#allocation10 + $0x248] sm:$0xf]
    %v1111 = vld [vmem:[#allocation10 + $0x24c] sm:$0xf]
    %v1112 = vld [vmem:[#allocation10 + $0x250] sm:$0xf]
    %v1113 = vld [vmem:[#allocation10 + $0x254] sm:$0xf]
    %v1114 = vld [vmem:[#allocation10 + $0x258] sm:$0xf]
    %v1115 = vld [vmem:[#allocation10 + $0x25c] sm:$0xf]
    %v1116 = vld [vmem:[#allocation10 + $0x260] sm:$0xf]
    %v1117 = vld [vmem:[#allocation10 + $0x264] sm:$0xf]
    %v1118 = vld [vmem:[#allocation10 + $0x268] sm:$0xf]
    %v1119 = vld [vmem:[#allocation10 + $0x26c] sm:$0xf]
    %v1120 = vld [vmem:[#allocation10 + $0x270] sm:$0xf]
    %v1121 = vld [vmem:[#allocation10 + $0x274] sm:$0xf]
    %v1122 = vld [vmem:[#allocation10 + $0x278] sm:$0xf]
    %v1123 = vld [vmem:[#allocation10 + $0x27c] sm:$0xf]
    %v1124 = vld [vmem:[#allocation10 + $0x280] sm:$0xf]
    %v1125 = vld [vmem:[#allocation10 + $0x284] sm:$0xf]
    %v1126 = vld [vmem:[#allocation10 + $0x288] sm:$0xf]
    %v1127 = vld [vmem:[#allocation10 + $0x28c] sm:$0xf]
    %v1128 = vld [vmem:[#allocation10 + $0x290] sm:$0xf]
    %v1129 = vld [vmem:[#allocation10 + $0x294] sm:$0xf]
    %v1130 = vld [vmem:[#allocation10 + $0x298] sm:$0xf]
    %v1131 = vld [vmem:[#allocation10 + $0x29c] sm:$0xf]
    %v1132 = vld [vmem:[#allocation10 + $0x2a0] sm:$0xf]
    %v1133 = vld [vmem:[#allocation10 + $0x2a4] sm:$0xf]
    %v1134 = vld [vmem:[#allocation10 + $0x2a8] sm:$0xf]
    %v1135 = vld [vmem:[#allocation10 + $0x2ac] sm:$0xf]
    %v1136 = vld [vmem:[#allocation10 + $0x2b0] sm:$0xf]
    %v1137 = vld [vmem:[#allocation10 + $0x2b4] sm:$0xf]
    %v1138 = vld [vmem:[#allocation10 + $0x2b8] sm:$0xf]
    %v1139 = vld [vmem:[#allocation10 + $0x2bc] sm:$0xf]
    %v1140 = vld [vmem:[#allocation10 + $0x2c0] sm:$0xf]
    %v1141 = vld [vmem:[#allocation10 + $0x2c4] sm:$0xf]
    %v1142 = vld [vmem:[#allocation10 + $0x2c8] sm:$0xf]
    %v1143 = vld [vmem:[#allocation10 + $0x2cc] sm:$0xf]
    %v1144 = vld [vmem:[#allocation10 + $0x2d0] sm:$0xf]
    %v1145 = vld [vmem:[#allocation10 + $0x2d4] sm:$0xf]
    %v1146 = vld [vmem:[#allocation10 + $0x2d8] sm:$0xf]
    %v1147 = vld [vmem:[#allocation10 + $0x2dc] sm:$0xf]
    %v1148 = vld [vmem:[#allocation10 + $0x2e0] sm:$0xf]
    %v1149 = vld [vmem:[#allocation10 + $0x2e4] sm:$0xf]
    %v1150 = vld [vmem:[#allocation10 + $0x2e8] sm:$0xf]
    %v1151 = vld [vmem:[#allocation10 + $0x2ec] sm:$0xf]
    %v1152 = vld [vmem:[#allocation10 + $0x2f0] sm:$0xf]
    %v1153 = vld [vmem:[#allocation10 + $0x2f4] sm:$0xf]
    %v1154 = vld [vmem:[#allocation10 + $0x2f8] sm:$0xf]
    %v1155 = vld [vmem:[#allocation10 + $0x2fc] sm:$0xf]
    %v1156 = vld [vmem:[#allocation10 + $0x300] sm:$0xf]
    %v1157 = vld [vmem:[#allocation10 + $0x304] sm:$0xf]
    %v1158 = vld [vmem:[#allocation10 + $0x308] sm:$0xf]
    %v1159 = vld [vmem:[#allocation10 + $0x30c] sm:$0xf]
    %v1160 = vld [vmem:[#allocation10 + $0x310] sm:$0xf]
    %v1161 = vld [vmem:[#allocation10 + $0x314] sm:$0xf]
    %v1162 = vld [vmem:[#allocation10 + $0x318] sm:$0xf]
    %v1163 = vld [vmem:[#allocation10 + $0x31c] sm:$0xf]
    %v1164 = vld [vmem:[#allocation10 + $0x320] sm:$0xf]
    %v1165 = vld [vmem:[#allocation10 + $0x324] sm:$0xf]
    %v1166 = vld [vmem:[#allocation10 + $0x328] sm:$0xf]
    %v1167 = vld [vmem:[#allocation10 + $0x32c] sm:$0xf]
    %v1168 = vld [vmem:[#allocation10 + $0x330] sm:$0xf]
    %v1169 = vld [vmem:[#allocation10 + $0x334] sm:$0xf]
    %v1170 = vld [vmem:[#allocation10 + $0x338] sm:$0xf]
    %v1171 = vld [vmem:[#allocation10 + $0x33c] sm:$0xf]
    %v1172 = vld [vmem:[#allocation10 + $0x340] sm:$0xf]
    %v1173 = vld [vmem:[#allocation10 + $0x344] sm:$0xf]
    %v1174 = vld [vmem:[#allocation10 + $0x348] sm:$0xf]
    %v1175 = vld [vmem:[#allocation10 + $0x34c] sm:$0xf]
    %v1176 = vld [vmem:[#allocation10 + $0x350] sm:$0xf]
    %v1177 = vld [vmem:[#allocation10 + $0x354] sm:$0xf]
    %v1178 = vld [vmem:[#allocation10 + $0x358] sm:$0xf]
    %v1179 = vld [vmem:[#allocation10 + $0x35c] sm:$0xf]
    %v1180 = vld [vmem:[#allocation10 + $0x360] sm:$0xf]
    %v1181 = vld [vmem:[#allocation10 + $0x364] sm:$0xf]
    %v1182 = vld [vmem:[#allocation10 + $0x368] sm:$0xf]
    %v1183 = vld [vmem:[#allocation10 + $0x36c] sm:$0xf]
    %v1184 = vld [vmem:[#allocation10 + $0x370] sm:$0xf]
    %v1185 = vld [vmem:[#allocation10 + $0x374] sm:$0xf]
    %v1186 = vld [vmem:[#allocation10 + $0x378] sm:$0xf]
    %v1187 = vld [vmem:[#allocation10 + $0x37c] sm:$0xf]
    %v1188 = vld [vmem:[#allocation10 + $0x380] sm:$0xf]
    %v1189 = vld [vmem:[#allocation10 + $0x384] sm:$0xf]
    %v1190 = vld [vmem:[#allocation10 + $0x388] sm:$0xf]
    %v1191 = vld [vmem:[#allocation10 + $0x38c] sm:$0xf]
    %v1192 = vld [vmem:[#allocation10 + $0x390] sm:$0xf]
    %v1193 = vld [vmem:[#allocation10 + $0x394] sm:$0xf]
    %v1194 = vld [vmem:[#allocation10 + $0x398] sm:$0xf]
    %v1195 = vld [vmem:[#allocation10 + $0x39c] sm:$0xf]
    %v1196 = vld [vmem:[#allocation10 + $0x3a0] sm:$0xf]
    %v1197 = vld [vmem:[#allocation10 + $0x3a4] sm:$0xf]
    %v1198 = vld [vmem:[#allocation10 + $0x3a8] sm:$0xf]
    %v1199 = vld [vmem:[#allocation10 + $0x3ac] sm:$0xf]
    %v1200 = vld [vmem:[#allocation10 + $0x3b0] sm:$0xf]
    %v1201 = vld [vmem:[#allocation10 + $0x3b4] sm:$0xf]
    %v1202 = vld [vmem:[#allocation10 + $0x3b8] sm:$0xf]
    %v1203 = vld [vmem:[#allocation10 + $0x3bc] sm:$0xf]
    %v1204 = vld [vmem:[#allocation10 + $0x3c0] sm:$0xf]
    %v1205 = vld [vmem:[#allocation10 + $0x3c4] sm:$0xf]
    %v1206 = vld [vmem:[#allocation10 + $0x3c8] sm:$0xf]
    %v1207 = vld [vmem:[#allocation10 + $0x3cc] sm:$0xf]
    %v1208 = vld [vmem:[#allocation10 + $0x3d0] sm:$0xf]
    %v1209 = vld [vmem:[#allocation10 + $0x3d4] sm:$0xf]
    %v1210 = vld [vmem:[#allocation10 + $0x3d8] sm:$0xf]
    %v1211 = vld [vmem:[#allocation10 + $0x3dc] sm:$0xf]
    %v1212 = vld [vmem:[#allocation10 + $0x3e0] sm:$0xf]
    %v1213 = vld [vmem:[#allocation10 + $0x3e4] sm:$0xf]
    %v1214 = vld [vmem:[#allocation10 + $0x3e8] sm:$0xf]
    %v1215 = vld [vmem:[#allocation10 + $0x3ec] sm:$0xf]
    %v1216 = vld [vmem:[#allocation10 + $0x3f0] sm:$0xf]
    %v1217 = vld [vmem:[#allocation10 + $0x3f4] sm:$0xf]
    %v1218 = vld [vmem:[#allocation10 + $0x3f8] sm:$0xf]
    %v1219 = vld [vmem:[#allocation10 + $0x3fc] sm:$0xf]
    %v1220 = vld [vmem:[%s6] sm:$0x1]
    %v1222 = vlaneseq
    %v1223 = vshrl.u32 %v1222, 7
    %v1224 = vsub.s32 0, %v1223
    %v1225 = vrot.slane %v1220, %v1224
    %v1483 = vunpack.c.l.b16 %v964
    %v1484 = vunpack.c.l.b16 %v965
    %v1485 = vunpack.c.l.b16 %v966
    %v1486 = vunpack.c.l.b16 %v967
    %v1487 = vunpack.c.l.b16 %v968
    %v1488 = vunpack.c.l.b16 %v969
    %v1489 = vunpack.c.l.b16 %v970
    %v1490 = vunpack.c.l.b16 %v971
    %v1491 = vunpack.c.l.b16 %v972
    %v1492 = vunpack.c.l.b16 %v973
    %v1493 = vunpack.c.l.b16 %v974
    %v1494 = vunpack.c.l.b16 %v975
    %v1495 = vunpack.c.l.b16 %v976
    %v1496 = vunpack.c.l.b16 %v977
    %v1497 = vunpack.c.l.b16 %v978
    %v1498 = vunpack.c.l.b16 %v979
    %v1499 = vunpack.c.l.b16 %v980
    %v1500 = vunpack.c.l.b16 %v981
    %v1501 = vunpack.c.l.b16 %v982
    %v1502 = vunpack.c.l.b16 %v983
    %v1503 = vunpack.c.l.b16 %v984
    %v1504 = vunpack.c.l.b16 %v985
    %v1505 = vunpack.c.l.b16 %v986
    %v1506 = vunpack.c.l.b16 %v987
    %v1507 = vunpack.c.l.b16 %v988
    %v1508 = vunpack.c.l.b16 %v989
    %v1509 = vunpack.c.l.b16 %v990
    %v1510 = vunpack.c.l.b16 %v991
    %v1511 = vunpack.c.l.b16 %v992
    %v1512 = vunpack.c.l.b16 %v993
    %v1513 = vunpack.c.l.b16 %v994
    %v1514 = vunpack.c.l.b16 %v995
    %v1515 = vunpack.c.l.b16 %v996
    %v1516 = vunpack.c.l.b16 %v997
    %v1517 = vunpack.c.l.b16 %v998
    %v1518 = vunpack.c.l.b16 %v999
    %v1519 = vunpack.c.l.b16 %v1000
    %v1520 = vunpack.c.l.b16 %v1001
    %v1521 = vunpack.c.l.b16 %v1002
    %v1522 = vunpack.c.l.b16 %v1003
    %v1523 = vunpack.c.l.b16 %v1004
    %v1524 = vunpack.c.l.b16 %v1005
    %v1525 = vunpack.c.l.b16 %v1006
    %v1526 = vunpack.c.l.b16 %v1007
    %v1527 = vunpack.c.l.b16 %v1008
    %v1528 = vunpack.c.l.b16 %v1009
    %v1529 = vunpack.c.l.b16 %v1010
    %v1530 = vunpack.c.l.b16 %v1011
    %v1531 = vunpack.c.l.b16 %v1012
    %v1532 = vunpack.c.l.b16 %v1013
    %v1533 = vunpack.c.l.b16 %v1014
    %v1534 = vunpack.c.l.b16 %v1015
    %v1535 = vunpack.c.l.b16 %v1016
    %v1536 = vunpack.c.l.b16 %v1017
    %v1537 = vunpack.c.l.b16 %v1018
    %v1538 = vunpack.c.l.b16 %v1019
    %v1539 = vunpack.c.l.b16 %v1020
    %v1540 = vunpack.c.l.b16 %v1021
    %v1541 = vunpack.c.l.b16 %v1022
    %v1542 = vunpack.c.l.b16 %v1023
    %v1543 = vunpack.c.l.b16 %v1024
    %v1544 = vunpack.c.l.b16 %v1025
    %v1545 = vunpack.c.l.b16 %v1026
    %v1546 = vunpack.c.l.b16 %v1027
    %v1547 = vunpack.c.l.b16 %v1028
    %v1548 = vunpack.c.l.b16 %v1029
    %v1549 = vunpack.c.l.b16 %v1030
    %v1550 = vunpack.c.l.b16 %v1031
    %v1551 = vunpack.c.l.b16 %v1032
    %v1552 = vunpack.c.l.b16 %v1033
    %v1553 = vunpack.c.l.b16 %v1034
    %v1554 = vunpack.c.l.b16 %v1035
    %v1555 = vunpack.c.l.b16 %v1036
    %v1556 = vunpack.c.l.b16 %v1037
    %v1557 = vunpack.c.l.b16 %v1038
    %v1558 = vunpack.c.l.b16 %v1039
    %v1559 = vunpack.c.l.b16 %v1040
    %v1560 = vunpack.c.l.b16 %v1041
    %v1561 = vunpack.c.l.b16 %v1042
    %v1562 = vunpack.c.l.b16 %v1043
    %v1563 = vunpack.c.l.b16 %v1044
    %v1564 = vunpack.c.l.b16 %v1045
    %v1565 = vunpack.c.l.b16 %v1046
    %v1566 = vunpack.c.l.b16 %v1047
    %v1567 = vunpack.c.l.b16 %v1048
    %v1568 = vunpack.c.l.b16 %v1049
    %v1569 = vunpack.c.l.b16 %v1050
    %v1570 = vunpack.c.l.b16 %v1051
    %v1571 = vunpack.c.l.b16 %v1052
    %v1572 = vunpack.c.l.b16 %v1053
    %v1573 = vunpack.c.l.b16 %v1054
    %v1574 = vunpack.c.l.b16 %v1055
    %v1575 = vunpack.c.l.b16 %v1056
    %v1576 = vunpack.c.l.b16 %v1057
    %v1577 = vunpack.c.l.b16 %v1058
    %v1578 = vunpack.c.l.b16 %v1059
    %v1579 = vunpack.c.l.b16 %v1060
    %v1580 = vunpack.c.l.b16 %v1061
    %v1581 = vunpack.c.l.b16 %v1062
    %v1582 = vunpack.c.l.b16 %v1063
    %v1583 = vunpack.c.l.b16 %v1064
    %v1584 = vunpack.c.l.b16 %v1065
    %v1585 = vunpack.c.l.b16 %v1066
    %v1586 = vunpack.c.l.b16 %v1067
    %v1587 = vunpack.c.l.b16 %v1068
    %v1588 = vunpack.c.l.b16 %v1069
    %v1589 = vunpack.c.l.b16 %v1070
    %v1590 = vunpack.c.l.b16 %v1071
    %v1591 = vunpack.c.l.b16 %v1072
    %v1592 = vunpack.c.l.b16 %v1073
    %v1593 = vunpack.c.l.b16 %v1074
    %v1594 = vunpack.c.l.b16 %v1075
    %v1595 = vunpack.c.l.b16 %v1076
    %v1596 = vunpack.c.l.b16 %v1077
    %v1597 = vunpack.c.l.b16 %v1078
    %v1598 = vunpack.c.l.b16 %v1079
    %v1599 = vunpack.c.l.b16 %v1080
    %v1600 = vunpack.c.l.b16 %v1081
    %v1601 = vunpack.c.l.b16 %v1082
    %v1602 = vunpack.c.l.b16 %v1083
    %v1603 = vunpack.c.l.b16 %v1084
    %v1604 = vunpack.c.l.b16 %v1085
    %v1605 = vunpack.c.l.b16 %v1086
    %v1606 = vunpack.c.l.b16 %v1087
    %v1607 = vunpack.c.l.b16 %v1088
    %v1608 = vunpack.c.l.b16 %v1089
    %v1609 = vunpack.c.l.b16 %v1090
    %v1610 = vunpack.c.l.b16 %v1091
    %v1611 = vunpack.c.l.b16 %v1092
    %v1612 = vunpack.c.l.b16 %v1093
    %v1613 = vunpack.c.l.b16 %v1094
    %v1614 = vunpack.c.l.b16 %v1095
    %v1615 = vunpack.c.l.b16 %v1096
    %v1616 = vunpack.c.l.b16 %v1097
    %v1617 = vunpack.c.l.b16 %v1098
    %v1618 = vunpack.c.l.b16 %v1099
    %v1619 = vunpack.c.l.b16 %v1100
    %v1620 = vunpack.c.l.b16 %v1101
    %v1621 = vunpack.c.l.b16 %v1102
    %v1622 = vunpack.c.l.b16 %v1103
    %v1623 = vunpack.c.l.b16 %v1104
    %v1624 = vunpack.c.l.b16 %v1105
    %v1625 = vunpack.c.l.b16 %v1106
    %v1626 = vunpack.c.l.b16 %v1107
    %v1627 = vunpack.c.l.b16 %v1108
    %v1628 = vunpack.c.l.b16 %v1109
    %v1629 = vunpack.c.l.b16 %v1110
    %v1630 = vunpack.c.l.b16 %v1111
    %v1631 = vunpack.c.l.b16 %v1112
    %v1632 = vunpack.c.l.b16 %v1113
    %v1633 = vunpack.c.l.b16 %v1114
    %v1634 = vunpack.c.l.b16 %v1115
    %v1635 = vunpack.c.l.b16 %v1116
    %v1636 = vunpack.c.l.b16 %v1117
    %v1637 = vunpack.c.l.b16 %v1118
    %v1638 = vunpack.c.l.b16 %v1119
    %v1639 = vunpack.c.l.b16 %v1120
    %v1640 = vunpack.c.l.b16 %v1121
    %v1641 = vunpack.c.l.b16 %v1122
    %v1642 = vunpack.c.l.b16 %v1123
    %v1643 = vunpack.c.l.b16 %v1124
    %v1644 = vunpack.c.l.b16 %v1125
    %v1645 = vunpack.c.l.b16 %v1126
    %v1646 = vunpack.c.l.b16 %v1127
    %v1647 = vunpack.c.l.b16 %v1128
    %v1648 = vunpack.c.l.b16 %v1129
    %v1649 = vunpack.c.l.b16 %v1130
    %v1650 = vunpack.c.l.b16 %v1131
    %v1651 = vunpack.c.l.b16 %v1132
    %v1652 = vunpack.c.l.b16 %v1133
    %v1653 = vunpack.c.l.b16 %v1134
    %v1654 = vunpack.c.l.b16 %v1135
    %v1655 = vunpack.c.l.b16 %v1136
    %v1656 = vunpack.c.l.b16 %v1137
    %v1657 = vunpack.c.l.b16 %v1138
    %v1658 = vunpack.c.l.b16 %v1139
    %v1659 = vunpack.c.l.b16 %v1140
    %v1660 = vunpack.c.l.b16 %v1141
    %v1661 = vunpack.c.l.b16 %v1142
    %v1662 = vunpack.c.l.b16 %v1143
    %v1663 = vunpack.c.l.b16 %v1144
    %v1664 = vunpack.c.l.b16 %v1145
    %v1665 = vunpack.c.l.b16 %v1146
    %v1666 = vunpack.c.l.b16 %v1147
    %v1667 = vunpack.c.l.b16 %v1148
    %v1668 = vunpack.c.l.b16 %v1149
    %v1669 = vunpack.c.l.b16 %v1150
    %v1670 = vunpack.c.l.b16 %v1151
    %v1671 = vunpack.c.l.b16 %v1152
    %v1672 = vunpack.c.l.b16 %v1153
    %v1673 = vunpack.c.l.b16 %v1154
    %v1674 = vunpack.c.l.b16 %v1155
    %v1675 = vunpack.c.l.b16 %v1156
    %v1676 = vunpack.c.l.b16 %v1157
    %v1677 = vunpack.c.l.b16 %v1158
    %v1678 = vunpack.c.l.b16 %v1159
    %v1679 = vunpack.c.l.b16 %v1160
    %v1680 = vunpack.c.l.b16 %v1161
    %v1681 = vunpack.c.l.b16 %v1162
    %v1682 = vunpack.c.l.b16 %v1163
    %v1683 = vunpack.c.l.b16 %v1164
    %v1684 = vunpack.c.l.b16 %v1165
    %v1685 = vunpack.c.l.b16 %v1166
    %v1686 = vunpack.c.l.b16 %v1167
    %v1687 = vunpack.c.l.b16 %v1168
    %v1688 = vunpack.c.l.b16 %v1169
    %v1689 = vunpack.c.l.b16 %v1170
    %v1690 = vunpack.c.l.b16 %v1171
    %v1691 = vunpack.c.l.b16 %v1172
    %v1692 = vunpack.c.l.b16 %v1173
    %v1693 = vunpack.c.l.b16 %v1174
    %v1694 = vunpack.c.l.b16 %v1175
    %v1695 = vunpack.c.l.b16 %v1176
    %v1696 = vunpack.c.l.b16 %v1177
    %v1697 = vunpack.c.l.b16 %v1178
    %v1698 = vunpack.c.l.b16 %v1179
    %v1699 = vunpack.c.l.b16 %v1180
    %v1700 = vunpack.c.l.b16 %v1181
    %v1701 = vunpack.c.l.b16 %v1182
    %v1702 = vunpack.c.l.b16 %v1183
    %v1703 = vunpack.c.l.b16 %v1184
    %v1704 = vunpack.c.l.b16 %v1185
    %v1705 = vunpack.c.l.b16 %v1186
    %v1706 = vunpack.c.l.b16 %v1187
    %v1707 = vunpack.c.l.b16 %v1188
    %v1708 = vunpack.c.l.b16 %v1189
    %v1709 = vunpack.c.l.b16 %v1190
    %v1710 = vunpack.c.l.b16 %v1191
    %v1711 = vunpack.c.l.b16 %v1192
    %v1712 = vunpack.c.l.b16 %v1193
    %v1713 = vunpack.c.l.b16 %v1194
    %v1714 = vunpack.c.l.b16 %v1195
    %v1715 = vunpack.c.l.b16 %v1196
    %v1716 = vunpack.c.l.b16 %v1197
    %v1717 = vunpack.c.l.b16 %v1198
    %v1718 = vunpack.c.l.b16 %v1199
    %v1719 = vunpack.c.l.b16 %v1200
    %v1720 = vunpack.c.l.b16 %v1201
    %v1721 = vunpack.c.l.b16 %v1202
    %v1722 = vunpack.c.l.b16 %v1203
    %v1723 = vunpack.c.l.b16 %v1204
    %v1724 = vunpack.c.l.b16 %v1205
    %v1725 = vunpack.c.l.b16 %v1206
    %v1726 = vunpack.c.l.b16 %v1207
    %v1727 = vunpack.c.l.b16 %v1208
    %v1728 = vunpack.c.l.b16 %v1209
    %v1729 = vunpack.c.l.b16 %v1210
    %v1730 = vunpack.c.l.b16 %v1211
    %v1731 = vunpack.c.l.b16 %v1212
    %v1732 = vunpack.c.l.b16 %v1213
    %v1733 = vunpack.c.l.b16 %v1214
    %v1734 = vunpack.c.l.b16 %v1215
    %v1735 = vunpack.c.l.b16 %v1216
    %v1736 = vunpack.c.l.b16 %v1217
    %v1737 = vunpack.c.l.b16 %v1218
    %v1738 = vunpack.c.l.b16 %v1219
    %v1739 = vpack.c.b16 %v1484, %v1483
    %v1740 = vpack.c.b16 %v1486, %v1485
    %v1741 = vpack.c.b16 %v1488, %v1487
    %v1742 = vpack.c.b16 %v1490, %v1489
    %v1743 = vpack.c.b16 %v1492, %v1491
    %v1744 = vpack.c.b16 %v1494, %v1493
    %v1745 = vpack.c.b16 %v1496, %v1495
    %v1746 = vpack.c.b16 %v1498, %v1497
    %v1747 = vpack.c.b16 %v1500, %v1499
    %v1748 = vpack.c.b16 %v1502, %v1501
    %v1749 = vpack.c.b16 %v1504, %v1503
    %v1750 = vpack.c.b16 %v1506, %v1505
    %v1751 = vpack.c.b16 %v1508, %v1507
    %v1752 = vpack.c.b16 %v1510, %v1509
    %v1753 = vpack.c.b16 %v1512, %v1511
    %v1754 = vpack.c.b16 %v1514, %v1513
    %v1755 = vpack.c.b16 %v1516, %v1515
    %v1756 = vpack.c.b16 %v1518, %v1517
    %v1757 = vpack.c.b16 %v1520, %v1519
    %v1758 = vpack.c.b16 %v1522, %v1521
    %v1759 = vpack.c.b16 %v1524, %v1523
    %v1760 = vpack.c.b16 %v1526, %v1525
    %v1761 = vpack.c.b16 %v1528, %v1527
    %v1762 = vpack.c.b16 %v1530, %v1529
    %v1763 = vpack.c.b16 %v1532, %v1531
    %v1764 = vpack.c.b16 %v1534, %v1533
    %v1765 = vpack.c.b16 %v1536, %v1535
    %v1766 = vpack.c.b16 %v1538, %v1537
    %v1767 = vpack.c.b16 %v1540, %v1539
    %v1768 = vpack.c.b16 %v1542, %v1541
    %v1769 = vpack.c.b16 %v1544, %v1543
    %v1770 = vpack.c.b16 %v1546, %v1545
    %v1771 = vpack.c.b16 %v1548, %v1547
    %v1772 = vpack.c.b16 %v1550, %v1549
    %v1773 = vpack.c.b16 %v1552, %v1551
    %v1774 = vpack.c.b16 %v1554, %v1553
    %v1775 = vpack.c.b16 %v1556, %v1555
    %v1776 = vpack.c.b16 %v1558, %v1557
    %v1777 = vpack.c.b16 %v1560, %v1559
    %v1778 = vpack.c.b16 %v1562, %v1561
    %v1779 = vpack.c.b16 %v1564, %v1563
    %v1780 = vpack.c.b16 %v1566, %v1565
    %v1781 = vpack.c.b16 %v1568, %v1567
    %v1782 = vpack.c.b16 %v1570, %v1569
    %v1783 = vpack.c.b16 %v1572, %v1571
    %v1784 = vpack.c.b16 %v1574, %v1573
    %v1785 = vpack.c.b16 %v1576, %v1575
    %v1786 = vpack.c.b16 %v1578, %v1577
    %v1787 = vpack.c.b16 %v1580, %v1579
    %v1788 = vpack.c.b16 %v1582, %v1581
    %v1789 = vpack.c.b16 %v1584, %v1583
    %v1790 = vpack.c.b16 %v1586, %v1585
    %v1791 = vpack.c.b16 %v1588, %v1587
    %v1792 = vpack.c.b16 %v1590, %v1589
    %v1793 = vpack.c.b16 %v1592, %v1591
    %v1794 = vpack.c.b16 %v1594, %v1593
    %v1795 = vpack.c.b16 %v1596, %v1595
    %v1796 = vpack.c.b16 %v1598, %v1597
    %v1797 = vpack.c.b16 %v1600, %v1599
    %v1798 = vpack.c.b16 %v1602, %v1601
    %v1799 = vpack.c.b16 %v1604, %v1603
    %v1800 = vpack.c.b16 %v1606, %v1605
    %v1801 = vpack.c.b16 %v1608, %v1607
    %v1802 = vpack.c.b16 %v1610, %v1609
    %v1803 = vpack.c.b16 %v1612, %v1611
    %v1804 = vpack.c.b16 %v1614, %v1613
    %v1805 = vpack.c.b16 %v1616, %v1615
    %v1806 = vpack.c.b16 %v1618, %v1617
    %v1807 = vpack.c.b16 %v1620, %v1619
    %v1808 = vpack.c.b16 %v1622, %v1621
    %v1809 = vpack.c.b16 %v1624, %v1623
    %v1810 = vpack.c.b16 %v1626, %v1625
    %v1811 = vpack.c.b16 %v1628, %v1627
    %v1812 = vpack.c.b16 %v1630, %v1629
    %v1813 = vpack.c.b16 %v1632, %v1631
    %v1814 = vpack.c.b16 %v1634, %v1633
    %v1815 = vpack.c.b16 %v1636, %v1635
    %v1816 = vpack.c.b16 %v1638, %v1637
    %v1817 = vpack.c.b16 %v1640, %v1639
    %v1818 = vpack.c.b16 %v1642, %v1641
    %v1819 = vpack.c.b16 %v1644, %v1643
    %v1820 = vpack.c.b16 %v1646, %v1645
    %v1821 = vpack.c.b16 %v1648, %v1647
    %v1822 = vpack.c.b16 %v1650, %v1649
    %v1823 = vpack.c.b16 %v1652, %v1651
    %v1824 = vpack.c.b16 %v1654, %v1653
    %v1825 = vpack.c.b16 %v1656, %v1655
    %v1826 = vpack.c.b16 %v1658, %v1657
    %v1827 = vpack.c.b16 %v1660, %v1659
    %v1828 = vpack.c.b16 %v1662, %v1661
    %v1829 = vpack.c.b16 %v1664, %v1663
    %v1830 = vpack.c.b16 %v1666, %v1665
    %v1831 = vpack.c.b16 %v1668, %v1667
    %v1832 = vpack.c.b16 %v1670, %v1669
    %v1833 = vpack.c.b16 %v1672, %v1671
    %v1834 = vpack.c.b16 %v1674, %v1673
    %v1835 = vpack.c.b16 %v1676, %v1675
    %v1836 = vpack.c.b16 %v1678, %v1677
    %v1837 = vpack.c.b16 %v1680, %v1679
    %v1838 = vpack.c.b16 %v1682, %v1681
    %v1839 = vpack.c.b16 %v1684, %v1683
    %v1840 = vpack.c.b16 %v1686, %v1685
    %v1841 = vpack.c.b16 %v1688, %v1687
    %v1842 = vpack.c.b16 %v1690, %v1689
    %v1843 = vpack.c.b16 %v1692, %v1691
    %v1844 = vpack.c.b16 %v1694, %v1693
    %v1845 = vpack.c.b16 %v1696, %v1695
    %v1846 = vpack.c.b16 %v1698, %v1697
    %v1847 = vpack.c.b16 %v1700, %v1699
    %v1848 = vpack.c.b16 %v1702, %v1701
    %v1849 = vpack.c.b16 %v1704, %v1703
    %v1850 = vpack.c.b16 %v1706, %v1705
    %v1851 = vpack.c.b16 %v1708, %v1707
    %v1852 = vpack.c.b16 %v1710, %v1709
    %v1853 = vpack.c.b16 %v1712, %v1711
    %v1854 = vpack.c.b16 %v1714, %v1713
    %v1855 = vpack.c.b16 %v1716, %v1715
    %v1856 = vpack.c.b16 %v1718, %v1717
    %v1857 = vpack.c.b16 %v1720, %v1719
    %v1858 = vpack.c.b16 %v1722, %v1721
    %v1859 = vpack.c.b16 %v1724, %v1723
    %v1860 = vpack.c.b16 %v1726, %v1725
    %v1861 = vpack.c.b16 %v1728, %v1727
    %v1862 = vpack.c.b16 %v1730, %v1729
    %v1863 = vpack.c.b16 %v1732, %v1731
    %v1864 = vpack.c.b16 %v1734, %v1733
    %v1865 = vpack.c.b16 %v1736, %v1735
    %v1866 = vpack.c.b16 %v1738, %v1737
    %1995 = vmatprep.subr.bf16.mxu0 0
    %1996 = vmatpush1.bf16.msra.mxu0 %v1739
    %1997 = vmatprep.subr.bf16.mxu0 0
    %1998 = vmatpush1.bf16.msra.mxu0 %v1740
    %1999 = vmatprep.subr.bf16.mxu0 0
    %2000 = vmatpush1.bf16.msra.mxu0 %v1741
    %2001 = vmatprep.subr.bf16.mxu0 0
    %2002 = vmatpush1.bf16.msra.mxu0 %v1742
    %2003 = vmatprep.subr.bf16.mxu0 0
    %2004 = vmatpush1.bf16.msra.mxu0 %v1743
    %2005 = vmatprep.subr.bf16.mxu0 0
    %2006 = vmatpush1.bf16.msra.mxu0 %v1744
    %2007 = vmatprep.subr.bf16.mxu0 0
    %2008 = vmatpush1.bf16.msra.mxu0 %v1745
    %2009 = vmatprep.subr.bf16.mxu0 0
    %2010 = vmatpush1.bf16.msra.mxu0 %v1746
    %2011 = vmatprep.subr.bf16.mxu0 0
    %2012 = vmatpush1.bf16.msra.mxu0 %v1747
    %2013 = vmatprep.subr.bf16.mxu0 0
    %2014 = vmatpush1.bf16.msra.mxu0 %v1748
    %2015 = vmatprep.subr.bf16.mxu0 0
    %2016 = vmatpush1.bf16.msra.mxu0 %v1749
    %2017 = vmatprep.subr.bf16.mxu0 0
    %2018 = vmatpush1.bf16.msra.mxu0 %v1750
    %2019 = vmatprep.subr.bf16.mxu0 0
    %2020 = vmatpush1.bf16.msra.mxu0 %v1751
    %2021 = vmatprep.subr.bf16.mxu0 0
    %2022 = vmatpush1.bf16.msra.mxu0 %v1752
    %2023 = vmatprep.subr.bf16.mxu0 0
    %2024 = vmatpush1.bf16.msra.mxu0 %v1753
    %2025 = vmatprep.subr.bf16.mxu0 0
    %2026 = vmatpush1.bf16.msra.mxu0 %v1754
    %2027 = vmatprep.mubr.bf16.mxu0 %v949
    %2028 = vmatmul.mubr.bf16.gmra.mrb[0].mxu0 %v948
    %v2029 = vpop.f32.mrb[0].mxu0
    %v2030 = vadd.f32 %v1225, %v2029
    %v2031 = vpop.f32.mrb[0].mxu0
    %v2032 = vpop.f32.mrb[0].mxu0
    %v2033 = vpop.f32.mrb[0].mxu0
    %2034 = vdwg.mxu0
    %2035 = vmatprep.subr.bf16.mxu0 0
    %2036 = vmatpush1.bf16.msra.mxu0 %v1755
    %2037 = vmatprep.subr.bf16.mxu0 0
    %2038 = vmatpush1.bf16.msra.mxu0 %v1756
    %2039 = vmatprep.subr.bf16.mxu0 0
    %2040 = vmatpush1.bf16.msra.mxu0 %v1757
    %2041 = vmatprep.subr.bf16.mxu0 0
    %2042 = vmatpush1.bf16.msra.mxu0 %v1758
    %2043 = vmatprep.subr.bf16.mxu0 0
    %2044 = vmatpush1.bf16.msra.mxu0 %v1759
    %2045 = vmatprep.subr.bf16.mxu0 0
    %2046 = vmatpush1.bf16.msra.mxu0 %v1760
    %2047 = vmatprep.subr.bf16.mxu0 0
    %2048 = vmatpush1.bf16.msra.mxu0 %v1761
    %2049 = vmatprep.subr.bf16.mxu0 0
    %2050 = vmatpush1.bf16.msra.mxu0 %v1762
    %2051 = vmatprep.subr.bf16.mxu0 0
    %2052 = vmatpush1.bf16.msra.mxu0 %v1763
    %2053 = vmatprep.subr.bf16.mxu0 0
    %2054 = vmatpush1.bf16.msra.mxu0 %v1764
    %2055 = vmatprep.subr.bf16.mxu0 0
    %2056 = vmatpush1.bf16.msra.mxu0 %v1765
    %2057 = vmatprep.subr.bf16.mxu0 0
    %2058 = vmatpush1.bf16.msra.mxu0 %v1766
    %2059 = vmatprep.subr.bf16.mxu0 0
    %2060 = vmatpush1.bf16.msra.mxu0 %v1767
    %2061 = vmatprep.subr.bf16.mxu0 0
    %2062 = vmatpush1.bf16.msra.mxu0 %v1768
    %2063 = vmatprep.subr.bf16.mxu0 0
    %2064 = vmatpush1.bf16.msra.mxu0 %v1769
    %2065 = vmatprep.subr.bf16.mxu0 0
    %2066 = vmatpush1.bf16.msra.mxu0 %v1770
    %2067 = vmatprep.mubr.bf16.mxu0 %v951
    %2068 = vmatmul.mubr.bf16.gmra.mrb[0].mxu0 %v950
    %v2069 = vpop.f32.mrb[0].mxu0
    %v2070 = vadd.f32 %v2030, %v2069
    %v2071 = vpop.f32.mrb[0].mxu0
    %v2072 = vpop.f32.mrb[0].mxu0
    %v2073 = vpop.f32.mrb[0].mxu0
    %2074 = vdwg.mxu0
    %2075 = vmatprep.subr.bf16.mxu0 0
    %2076 = vmatpush1.bf16.msra.mxu0 %v1771
    %2077 = vmatprep.subr.bf16.mxu0 0
    %2078 = vmatpush1.bf16.msra.mxu0 %v1772
    %2079 = vmatprep.subr.bf16.mxu0 0
    %2080 = vmatpush1.bf16.msra.mxu0 %v1773
    %2081 = vmatprep.subr.bf16.mxu0 0
    %2082 = vmatpush1.bf16.msra.mxu0 %v1774
    %2083 = vmatprep.subr.bf16.mxu0 0
    %2084 = vmatpush1.bf16.msra.mxu0 %v1775
    %2085 = vmatprep.subr.bf16.mxu0 0
    %2086 = vmatpush1.bf16.msra.mxu0 %v1776
    %2087 = vmatprep.subr.bf16.mxu0 0
    %2088 = vmatpush1.bf16.msra.mxu0 %v1777
    %2089 = vmatprep.subr.bf16.mxu0 0
    %2090 = vmatpush1.bf16.msra.mxu0 %v1778
    %2091 = vmatprep.subr.bf16.mxu0 0
    %2092 = vmatpush1.bf16.msra.mxu0 %v1779
    %2093 = vmatprep.subr.bf16.mxu0 0
    %2094 = vmatpush1.bf16.msra.mxu0 %v1780
    %2095 = vmatprep.subr.bf16.mxu0 0
    %2096 = vmatpush1.bf16.msra.mxu0 %v1781
    %2097 = vmatprep.subr.bf16.mxu0 0
    %2098 = vmatpush1.bf16.msra.mxu0 %v1782
    %2099 = vmatprep.subr.bf16.mxu0 0
    %2100 = vmatpush1.bf16.msra.mxu0 %v1783
    %2101 = vmatprep.subr.bf16.mxu0 0
    %2102 = vmatpush1.bf16.msra.mxu0 %v1784
    %2103 = vmatprep.subr.bf16.mxu0 0
    %2104 = vmatpush1.bf16.msra.mxu0 %v1785
    %2105 = vmatprep.subr.bf16.mxu0 0
    %2106 = vmatpush1.bf16.msra.mxu0 %v1786
    %2107 = vmatprep.mubr.bf16.mxu0 %v953
    %2108 = vmatmul.mubr.bf16.gmra.mrb[0].mxu0 %v952
    %v2109 = vpop.f32.mrb[0].mxu0
    %v2110 = vadd.f32 %v2070, %v2109
    %v2111 = vpop.f32.mrb[0].mxu0
    %v2112 = vpop.f32.mrb[0].mxu0
    %v2113 = vpop.f32.mrb[0].mxu0
    %2114 = vdwg.mxu0
    %2115 = vmatprep.subr.bf16.mxu0 0
    %2116 = vmatpush1.bf16.msra.mxu0 %v1787
    %2117 = vmatprep.subr.bf16.mxu0 0
    %2118 = vmatpush1.bf16.msra.mxu0 %v1788
    %2119 = vmatprep.subr.bf16.mxu0 0
    %2120 = vmatpush1.bf16.msra.mxu0 %v1789
    %2121 = vmatprep.subr.bf16.mxu0 0
    %2122 = vmatpush1.bf16.msra.mxu0 %v1790
    %2123 = vmatprep.subr.bf16.mxu0 0
    %2124 = vmatpush1.bf16.msra.mxu0 %v1791
    %2125 = vmatprep.subr.bf16.mxu0 0
    %2126 = vmatpush1.bf16.msra.mxu0 %v1792
    %2127 = vmatprep.subr.bf16.mxu0 0
    %2128 = vmatpush1.bf16.msra.mxu0 %v1793
    %2129 = vmatprep.subr.bf16.mxu0 0
    %2130 = vmatpush1.bf16.msra.mxu0 %v1794
    %2131 = vmatprep.subr.bf16.mxu0 0
    %2132 = vmatpush1.bf16.msra.mxu0 %v1795
    %2133 = vmatprep.subr.bf16.mxu0 0
    %2134 = vmatpush1.bf16.msra.mxu0 %v1796
    %2135 = vmatprep.subr.bf16.mxu0 0
    %2136 = vmatpush1.bf16.msra.mxu0 %v1797
    %2137 = vmatprep.subr.bf16.mxu0 0
    %2138 = vmatpush1.bf16.msra.mxu0 %v1798
    %2139 = vmatprep.subr.bf16.mxu0 0
    %2140 = vmatpush1.bf16.msra.mxu0 %v1799
    %2141 = vmatprep.subr.bf16.mxu0 0
    %2142 = vmatpush1.bf16.msra.mxu0 %v1800
    %2143 = vmatprep.subr.bf16.mxu0 0
    %2144 = vmatpush1.bf16.msra.mxu0 %v1801
    %2145 = vmatprep.subr.bf16.mxu0 0
    %2146 = vmatpush1.bf16.msra.mxu0 %v1802
    %2147 = vmatprep.mubr.bf16.mxu0 %v955
    %2148 = vmatmul.mubr.bf16.gmra.mrb[0].mxu0 %v954
    %v2149 = vpop.f32.mrb[0].mxu0
    %v2150 = vadd.f32 %v2110, %v2149
    %v2151 = vpop.f32.mrb[0].mxu0
    %v2152 = vpop.f32.mrb[0].mxu0
    %v2153 = vpop.f32.mrb[0].mxu0
    %2154 = vdwg.mxu0
    %2155 = vmatprep.subr.bf16.mxu0 0
    %2156 = vmatpush1.bf16.msra.mxu0 %v1803
    %2157 = vmatprep.subr.bf16.mxu0 0
    %2158 = vmatpush1.bf16.msra.mxu0 %v1804
    %2159 = vmatprep.subr.bf16.mxu0 0
    %2160 = vmatpush1.bf16.msra.mxu0 %v1805
    %2161 = vmatprep.subr.bf16.mxu0 0
    %2162 = vmatpush1.bf16.msra.mxu0 %v1806
    %2163 = vmatprep.subr.bf16.mxu0 0
    %2164 = vmatpush1.bf16.msra.mxu0 %v1807
    %2165 = vmatprep.subr.bf16.mxu0 0
    %2166 = vmatpush1.bf16.msra.mxu0 %v1808
    %2167 = vmatprep.subr.bf16.mxu0 0
    %2168 = vmatpush1.bf16.msra.mxu0 %v1809
    %2169 = vmatprep.subr.bf16.mxu0 0
    %2170 = vmatpush1.bf16.msra.mxu0 %v1810
    %2171 = vmatprep.subr.bf16.mxu0 0
    %2172 = vmatpush1.bf16.msra.mxu0 %v1811
    %2173 = vmatprep.subr.bf16.mxu0 0
    %2174 = vmatpush1.bf16.msra.mxu0 %v1812
    %2175 = vmatprep.subr.bf16.mxu0 0
    %2176 = vmatpush1.bf16.msra.mxu0 %v1813
    %2177 = vmatprep.subr.bf16.mxu0 0
    %2178 = vmatpush1.bf16.msra.mxu0 %v1814
    %2179 = vmatprep.subr.bf16.mxu0 0
    %2180 = vmatpush1.bf16.msra.mxu0 %v1815
    %2181 = vmatprep.subr.bf16.mxu0 0
    %2182 = vmatpush1.bf16.msra.mxu0 %v1816
    %2183 = vmatprep.subr.bf16.mxu0 0
    %2184 = vmatpush1.bf16.msra.mxu0 %v1817
    %2185 = vmatprep.subr.bf16.mxu0 0
    %2186 = vmatpush1.bf16.msra.mxu0 %v1818
    %2187 = vmatprep.mubr.bf16.mxu0 %v957
    %2188 = vmatmul.mubr.bf16.gmra.mrb[0].mxu0 %v956
    %v2189 = vpop.f32.mrb[0].mxu0
    %v2190 = vadd.f32 %v2150, %v2189
    %v2191 = vpop.f32.mrb[0].mxu0
    %v2192 = vpop.f32.mrb[0].mxu0
    %v2193 = vpop.f32.mrb[0].mxu0
    %2194 = vdwg.mxu0
    %2195 = vmatprep.subr.bf16.mxu0 0
    %2196 = vmatpush1.bf16.msra.mxu0 %v1819
    %2197 = vmatprep.subr.bf16.mxu0 0
    %2198 = vmatpush1.bf16.msra.mxu0 %v1820
    %2199 = vmatprep.subr.bf16.mxu0 0
    %2200 = vmatpush1.bf16.msra.mxu0 %v1821
    %2201 = vmatprep.subr.bf16.mxu0 0
    %2202 = vmatpush1.bf16.msra.mxu0 %v1822
    %2203 = vmatprep.subr.bf16.mxu0 0
    %2204 = vmatpush1.bf16.msra.mxu0 %v1823
    %2205 = vmatprep.subr.bf16.mxu0 0
    %2206 = vmatpush1.bf16.msra.mxu0 %v1824
    %2207 = vmatprep.subr.bf16.mxu0 0
    %2208 = vmatpush1.bf16.msra.mxu0 %v1825
    %2209 = vmatprep.subr.bf16.mxu0 0
    %2210 = vmatpush1.bf16.msra.mxu0 %v1826
    %2211 = vmatprep.subr.bf16.mxu0 0
    %2212 = vmatpush1.bf16.msra.mxu0 %v1827
    %2213 = vmatprep.subr.bf16.mxu0 0
    %2214 = vmatpush1.bf16.msra.mxu0 %v1828
    %2215 = vmatprep.subr.bf16.mxu0 0
    %2216 = vmatpush1.bf16.msra.mxu0 %v1829
    %2217 = vmatprep.subr.bf16.mxu0 0
    %2218 = vmatpush1.bf16.msra.mxu0 %v1830
    %2219 = vmatprep.subr.bf16.mxu0 0
    %2220 = vmatpush1.bf16.msra.mxu0 %v1831
    %2221 = vmatprep.subr.bf16.mxu0 0
    %2222 = vmatpush1.bf16.msra.mxu0 %v1832
    %2223 = vmatprep.subr.bf16.mxu0 0
    %2224 = vmatpush1.bf16.msra.mxu0 %v1833
    %2225 = vmatprep.subr.bf16.mxu0 0
    %2226 = vmatpush1.bf16.msra.mxu0 %v1834
    %2227 = vmatprep.mubr.bf16.mxu0 %v959
    %2228 = vmatmul.mubr.bf16.gmra.mrb[0].mxu0 %v958
    %v2229 = vpop.f32.mrb[0].mxu0
    %v2230 = vadd.f32 %v2190, %v2229
    %v2231 = vpop.f32.mrb[0].mxu0
    %v2232 = vpop.f32.mrb[0].mxu0
    %v2233 = vpop.f32.mrb[0].mxu0
    %2234 = vdwg.mxu0
    %2235 = vmatprep.subr.bf16.mxu0 0
    %2236 = vmatpush1.bf16.msra.mxu0 %v1835
    %2237 = vmatprep.subr.bf16.mxu0 0
    %2238 = vmatpush1.bf16.msra.mxu0 %v1836
    %2239 = vmatprep.subr.bf16.mxu0 0
    %2240 = vmatpush1.bf16.msra.mxu0 %v1837
    %2241 = vmatprep.subr.bf16.mxu0 0
    %2242 = vmatpush1.bf16.msra.mxu0 %v1838
    %2243 = vmatprep.subr.bf16.mxu0 0
    %2244 = vmatpush1.bf16.msra.mxu0 %v1839
    %2245 = vmatprep.subr.bf16.mxu0 0
    %2246 = vmatpush1.bf16.msra.mxu0 %v1840
    %2247 = vmatprep.subr.bf16.mxu0 0
    %2248 = vmatpush1.bf16.msra.mxu0 %v1841
    %2249 = vmatprep.subr.bf16.mxu0 0
    %2250 = vmatpush1.bf16.msra.mxu0 %v1842
    %2251 = vmatprep.subr.bf16.mxu0 0
    %2252 = vmatpush1.bf16.msra.mxu0 %v1843
    %2253 = vmatprep.subr.bf16.mxu0 0
    %2254 = vmatpush1.bf16.msra.mxu0 %v1844
    %2255 = vmatprep.subr.bf16.mxu0 0
    %2256 = vmatpush1.bf16.msra.mxu0 %v1845
    %2257 = vmatprep.subr.bf16.mxu0 0
    %2258 = vmatpush1.bf16.msra.mxu0 %v1846
    %2259 = vmatprep.subr.bf16.mxu0 0
    %2260 = vmatpush1.bf16.msra.mxu0 %v1847
    %2261 = vmatprep.subr.bf16.mxu0 0
    %2262 = vmatpush1.bf16.msra.mxu0 %v1848
    %2263 = vmatprep.subr.bf16.mxu0 0
    %2264 = vmatpush1.bf16.msra.mxu0 %v1849
    %2265 = vmatprep.subr.bf16.mxu0 0
    %2266 = vmatpush1.bf16.msra.mxu0 %v1850
    %2267 = vmatprep.mubr.bf16.mxu0 %v961
    %2268 = vmatmul.mubr.bf16.gmra.mrb[0].mxu0 %v960
    %v2269 = vpop.f32.mrb[0].mxu0
    %v2270 = vadd.f32 %v2230, %v2269
    %v2271 = vpop.f32.mrb[0].mxu0
    %v2272 = vpop.f32.mrb[0].mxu0
    %v2273 = vpop.f32.mrb[0].mxu0
    %2274 = vdwg.mxu0
    %2275 = vmatprep.subr.bf16.mxu0 0
    %2276 = vmatpush1.bf16.msra.mxu0 %v1851
    %2277 = vmatprep.subr.bf16.mxu0 0
    %2278 = vmatpush1.bf16.msra.mxu0 %v1852
    %2279 = vmatprep.subr.bf16.mxu0 0
    %2280 = vmatpush1.bf16.msra.mxu0 %v1853
    %2281 = vmatprep.subr.bf16.mxu0 0
    %2282 = vmatpush1.bf16.msra.mxu0 %v1854
    %2283 = vmatprep.subr.bf16.mxu0 0
    %2284 = vmatpush1.bf16.msra.mxu0 %v1855
    %2285 = vmatprep.subr.bf16.mxu0 0
    %2286 = vmatpush1.bf16.msra.mxu0 %v1856
    %2287 = vmatprep.subr.bf16.mxu0 0
    %2288 = vmatpush1.bf16.msra.mxu0 %v1857
    %2289 = vmatprep.subr.bf16.mxu0 0
    %2290 = vmatpush1.bf16.msra.mxu0 %v1858
    %2291 = vmatprep.subr.bf16.mxu0 0
    %2292 = vmatpush1.bf16.msra.mxu0 %v1859
    %2293 = vmatprep.subr.bf16.mxu0 0
    %2294 = vmatpush1.bf16.msra.mxu0 %v1860
    %2295 = vmatprep.subr.bf16.mxu0 0
    %2296 = vmatpush1.bf16.msra.mxu0 %v1861
    %2297 = vmatprep.subr.bf16.mxu0 0
    %2298 = vmatpush1.bf16.msra.mxu0 %v1862
    %2299 = vmatprep.subr.bf16.mxu0 0
    %2300 = vmatpush1.bf16.msra.mxu0 %v1863
    %2301 = vmatprep.subr.bf16.mxu0 0
    %2302 = vmatpush1.bf16.msra.mxu0 %v1864
    %2303 = vmatprep.subr.bf16.mxu0 0
    %2304 = vmatpush1.bf16.msra.mxu0 %v1865
    %2305 = vmatprep.subr.bf16.mxu0 0
    %2306 = vmatpush1.bf16.msra.mxu0 %v1866
    %2307 = vmatprep.mubr.bf16.mxu0 %v963
    %2308 = vmatmul.mubr.bf16.gmra.mrb[0].mxu0 %v962
    %v2309 = vpop.f32.mrb[0].mxu0
    %v2310 = vadd.f32 %v2270, %v2309
    %v2311 = vpop.f32.mrb[0].mxu0
    %v2312 = vpop.f32.mrb[0].mxu0
    %v2313 = vpop.f32.mrb[0].mxu0
    %2314 = vdwg.mxu0
    %v2315 = vld [vmem:[%s7] sm:$0x1]
    %v2316 = vld [vmem:[%s8] sm:$0x1]
    %2317 = vadd.xlane.f32.xlu0 %v2310
    %v2318 = vpop.xlane.xlu0 %2317
    %v2319 = vmul.f32 %v2310, %v2310
    %2320 = vadd.xlane.f32.xlu0 %v2319
    %v2321 = vpop.xlane.xlu0 %2320
    %v2322 = vmul.f32 %v2318, 0.0078125
    %v2323 = vmul.f32 %v2321, 0.0078125
    %v2324 = vmul.f32 %v2322, %v2322
    %v2325 = vsub.f32 %v2323, %v2324
    %v2326 = vmax.f32 %v2325, 0.0
    %v2327 = vadd.f32 %v2326, 1e-05
    %v2328 = vrsqrt.pop %v2327
    %v2329 = vsub.f32 %v2310, %v2322
    %v2330 = vmul.f32 %v2329, %v2328
    %v2332 = vlaneseq
    %v2333 = vshrl.u32 %v2332, 7
    %v2334 = vsub.s32 0, %v2333
    %v2335 = vrot.slane %v2315, %v2334
    %v2337 = vmul.f32 %v2330, %v2335
    %v2339 = vlaneseq
    %v2340 = vshrl.u32 %v2339, 7
    %v2341 = vsub.s32 0, %v2340
    %v2342 = vrot.slane %v2316, %v2341
    %v2344 = vadd.f32 %v2337, %v2342
    %v2345 = vtanh.pop %v2344
    %v2346 = vpack.c.bf16 %v2345, %v2345
    %v2347 = vld [vmem:[#allocation11] sm:$0xf]
    %v2348 = vld [vmem:[#allocation11 + $0x4] sm:$0xf]
    %v2349 = vld [vmem:[#allocation11 + $0x8] sm:$0xf]
    %v2350 = vld [vmem:[#allocation11 + $0xc] sm:$0xf]
    %v2351 = vld [vmem:[#allocation11 + $0x10] sm:$0xf]
    %v2352 = vld [vmem:[#allocation11 + $0x14] sm:$0xf]
    %v2353 = vld [vmem:[#allocation11 + $0x18] sm:$0xf]
    %v2354 = vld [vmem:[#allocation11 + $0x1c] sm:$0xf]
    %v2355 = vld [vmem:[#allocation11 + $0x20] sm:$0xf]
    %v2356 = vld [vmem:[#allocation11 + $0x24] sm:$0xf]
    %v2357 = vld [vmem:[#allocation11 + $0x28] sm:$0xf]
    %v2358 = vld [vmem:[#allocation11 + $0x2c] sm:$0xf]
    %v2359 = vld [vmem:[#allocation11 + $0x30] sm:$0xf]
    %v2360 = vld [vmem:[#allocation11 + $0x34] sm:$0xf]
    %v2361 = vld [vmem:[#allocation11 + $0x38] sm:$0xf]
    %v2362 = vld [vmem:[#allocation11 + $0x3c] sm:$0xf]
    %v2363 = vld [vmem:[%s10] sm:$0x1]
    %v2365 = vlaneseq
    %v2366 = vshrl.u32 %v2365, 7
    %v2367 = vsub.s32 0, %v2366
    %v2368 = vrot.slane %v2363, %v2367
    %v2386 = vunpack.c.l.b16 %v2347
    %v2387 = vunpack.c.l.b16 %v2348
    %v2388 = vunpack.c.l.b16 %v2349
    %v2389 = vunpack.c.l.b16 %v2350
    %v2390 = vunpack.c.l.b16 %v2351
    %v2391 = vunpack.c.l.b16 %v2352
    %v2392 = vunpack.c.l.b16 %v2353
    %v2393 = vunpack.c.l.b16 %v2354
    %v2394 = vunpack.c.l.b16 %v2355
    %v2395 = vunpack.c.l.b16 %v2356
    %v2396 = vunpack.c.l.b16 %v2357
    %v2397 = vunpack.c.l.b16 %v2358
    %v2398 = vunpack.c.l.b16 %v2359
    %v2399 = vunpack.c.l.b16 %v2360
    %v2400 = vunpack.c.l.b16 %v2361
    %v2401 = vunpack.c.l.b16 %v2362
    %v2402 = vpack.c.b16 %v2387, %v2386
    %v2403 = vpack.c.b16 %v2389, %v2388
    %v2404 = vpack.c.b16 %v2391, %v2390
    %v2405 = vpack.c.b16 %v2393, %v2392
    %v2406 = vpack.c.b16 %v2395, %v2394
    %v2407 = vpack.c.b16 %v2397, %v2396
    %v2408 = vpack.c.b16 %v2399, %v2398
    %v2409 = vpack.c.b16 %v2401, %v2400
    %2418 = vmatprep.subr.bf16.mxu0 0
    %2419 = vmatpush1.bf16.msra.mxu0 %v2402
    %2420 = vmatprep.subr.bf16.mxu0 0
    %2421 = vmatpush1.bf16.msra.mxu0 %v2403
    %2422 = vmatprep.subr.bf16.mxu0 0
    %2423 = vmatpush1.bf16.msra.mxu0 %v2404
    %2424 = vmatprep.subr.bf16.mxu0 0
    %2425 = vmatpush1.bf16.msra.mxu0 %v2405
    %2426 = vmatprep.subr.bf16.mxu0 0
    %2427 = vmatpush1.bf16.msra.mxu0 %v2406
    %2428 = vmatprep.subr.bf16.mxu0 0
    %2429 = vmatpush1.bf16.msra.mxu0 %v2407
    %2430 = vmatprep.subr.bf16.mxu0 0
    %2431 = vmatpush1.bf16.msra.mxu0 %v2408
    %2432 = vmatprep.subr.bf16.mxu0 0
    %2433 = vmatpush1.bf16.msra.mxu0 %v2409
    %2434 = vmatprep.subr.bf16.mxu0 0
    %2435 = vmatpush1.bf16.msra.mxu0 0
    %2436 = vmatprep.subr.bf16.mxu0 0
    %2437 = vmatpush1.bf16.msra.mxu0 0
    %2438 = vmatprep.subr.bf16.mxu0 0
    %2439 = vmatpush1.bf16.msra.mxu0 0
    %2440 = vmatprep.subr.bf16.mxu0 0
    %2441 = vmatpush1.bf16.msra.mxu0 0
    %2442 = vmatprep.subr.bf16.mxu0 0
    %2443 = vmatpush1.bf16.msra.mxu0 0
    %2444 = vmatprep.subr.bf16.mxu0 0
    %2445 = vmatpush1.bf16.msra.mxu0 0
    %2446 = vmatprep.subr.bf16.mxu0 0
    %2447 = vmatpush1.bf16.msra.mxu0 0
    %2448 = vmatprep.subr.bf16.mxu0 0
    %2449 = vmatpush1.bf16.msra.mxu0 0
    %2450 = vmatprep.mubr.bf16.mxu0 0
    %2451 = vmatmul.mubr.bf16.gmra.mrb[0].mxu0 %v2346
    %v2452 = vpop.f32.mrb[0].mxu0
    %v2453 = vadd.f32 %v2368, %v2452
    %v2454 = vpop.f32.mrb[0].mxu0
    %v2455 = vpop.f32.mrb[0].mxu0
    %v2456 = vpop.f32.mrb[0].mxu0
    %2457 = vdwg.mxu0
    %v2458 = vld [vmem:[%s11] sm:$0x1]
    %v2459 = vld [vmem:[%s12] sm:$0x1]
    %2460 = vadd.xlane.f32.xlu0 %v2453
    %v2461 = vpop.xlane.xlu0 %2460
    %v2462 = vmul.f32 %v2453, %v2453
    %2463 = vadd.xlane.f32.xlu0 %v2462
    %v2464 = vpop.xlane.xlu0 %2463
    %v2465 = vmul.f32 %v2461, 0.0078125
    %v2466 = vmul.f32 %v2464, 0.0078125
    %v2467 = vmul.f32 %v2465, %v2465
    %v2468 = vsub.f32 %v2466, %v2467
    %v2469 = vmax.f32 %v2468, 0.0
    %v2470 = vadd.f32 %v2469, 1e-05
    %v2471 = vrsqrt.pop %v2470
    %v2472 = vsub.f32 %v2453, %v2465
    %v2473 = vmul.f32 %v2472, %v2471
    %v2475 = vlaneseq
    %v2476 = vshrl.u32 %v2475, 7
    %v2477 = vsub.s32 0, %v2476
    %v2478 = vrot.slane %v2458, %v2477
    %v2480 = vmul.f32 %v2473, %v2478
    %v2482 = vlaneseq
    %v2483 = vshrl.u32 %v2482, 7
    %v2484 = vsub.s32 0, %v2483
    %v2485 = vrot.slane %v2459, %v2484
    %v2487 = vadd.f32 %v2480, %v2485
    %v2488 = vtanh.pop %v2487
    %v2489 = vpack.c.bf16 %v2488, %v2488
    %v2490 = vunpack.c.l.bf16 %v2489
    %v2491 = vld [vmem:[%s13] sm:$0x1]
    %v2493 = vlaneseq
    %v2494 = vshrl.u32 %v2493, 7
    %v2495 = vsub.s32 0, %v2494
    %v2496 = vrot.slane %v2491, %v2495
    %v2498 = vmul.f32 %v2490, %v2496
    %2499 = vadd.xlane.f32.xlu0 %v2498
    %v2500 = vpop.xlane.xlu0 %2499
    %v2501 = vld [vmem:[#allocation2] sm:$0x1]
    %v2503 = vlaneseq
    %v2504 = vshrl.u32 %v2503, 7
    %v2505 = vsub.s32 0, %v2504
    %v2506 = vrot.slane %v2501, %v2505
    %v2508 = vadd.f32 %v2500, %v2506
    %vm2509 = vcmask 7168
    %2510 = vst.msk [vmem:[%s15] sm:$0xff] %vm2509, %v2508
    // Predicated region
    $region86: #{tpu_custom_call.1} parent=1 // pred_check
      _
    $region87: #{tpu_custom_call.1} parent=1 // pred_check_branch
      %2512 = sbr.rel (0) target = $region89
    $region88: #{tpu_custom_call.1} parent=1 // pred_region
      _
    $region89: #{tpu_custom_call.1} parent=1 // pred_fallthru
      _
    // Predicated region
    $region90: #{tpu_custom_call.1} parent=1 // pred_check
      _
    $region91: #{tpu_custom_call.1} parent=1 // pred_check_branch
      %2514 = sbr.rel (0) target = $region93
    $region92: #{tpu_custom_call.1} parent=1 // pred_region
      _
    $region93: #{tpu_custom_call.1} parent=1 // pred_fallthru
      _
    %2515 = vsyncpa [#allocation4], 1
    %2516 = vsyncpa [#allocation6], 1
    %2517 = vsyncpa [#allocation9], 1
    %2518 = vsyncpa [#allocation12], 1

</llo_original>
